<compile_context>
chip_gen: v7x
topology: tpu7x:2x2x1
jax: 0.10.0
libtpu: 0.0.40
codegen_flags: <defaults>
</compile_context>

<pallas_src>
import functools

import numpy as np
import jax
import jax.numpy as jnp
from jax.experimental import pallas as pl
from jax.experimental.pallas import tpu as pltpu


# ------------------------------ fused kernel --------------------------------

def _apnb_fused_kernel(x_ref, wv_ref, bv_ref, wk_ref, kscale_ref, kshift_ref,
                       pool_ref, ww_ref, bw_ref, woc_ref, wox_ref,
                       oscale_ref, oshift_ref,
                       out_ref, ctx_ref, *, s_valid, inv_sqrt_kc):
    f32 = jnp.float32
    bf16 = jnp.bfloat16

    x = x_ref[0]                                   # (C, HW)  f32
    x_bf = x.astype(bf16)

    # --- f_value: 1x1 conv + bias  ->  (Vc, HW)
    wv = wv_ref[...].astype(bf16)
    value = jnp.dot(wv, x_bf, preferred_element_type=f32) + bv_ref[...]

    # --- f_key (== f_query, shared): 1x1 conv + folded BN + ReLU  ->  (Kc, HW)
    wk = wk_ref[...].astype(bf16)
    kq = jnp.dot(wk, x_bf, preferred_element_type=f32)
    kq = jnp.maximum(kq * kscale_ref[...] + kshift_ref[...], 0.0)

    # --- PSP adaptive-avg-pool as a matmul with the (S_pad, HW) pooling matrix.
    pool_bf = pool_ref[...].astype(bf16)           # (S_pad, HW); padded rows are zero
    dn_last_last = (((1,), (1,)), ((), ()))        # contract HW (lanes) of both operands
    value_psp = jax.lax.dot_general(value.astype(bf16), pool_bf, dn_last_last,
                                    preferred_element_type=f32)     # (Vc, S_pad)
    key_psp = jax.lax.dot_general(pool_bf, kq.astype(bf16), dn_last_last,
                                  preferred_element_type=f32)       # (S_pad, Kc)

    # --- similarity (pooled axis on sublanes, HW on lanes), kept f32 (exp amplifies
    #     absolute error; this matmul is tiny since Kc is small by construction).
    sim = jnp.dot(key_psp, kq, preferred_element_type=f32) * inv_sqrt_kc  # (S_pad, HW)

    # mask the zero-padded pooled rows, then softmax over the pooled axis (axis 0)
    row = jax.lax.broadcasted_iota(jnp.int32, sim.shape, 0)
    sim = jnp.where(row < s_valid, sim, -1e30)
    m = jnp.max(sim, axis=0, keepdims=True)                              # (1, HW)
    p = jnp.exp(sim - m)
    denom = jnp.sum(p, axis=0, keepdims=True)                            # (1, HW)
    attn = p * pl.reciprocal(denom, approx=True)                         # (S_pad, HW)

    # --- context = value_psp @ attn  ->  (Vc, HW)
    ctx = jnp.dot(value_psp.astype(bf16), attn.astype(bf16),
                  preferred_element_type=f32)
    ctx_ref[0] = ctx.astype(ctx_ref.dtype)

    # --- W conv (zero-initialized in the module; kept for trained weights)
    ctx_w = jnp.dot(ww_ref[...].astype(bf16), ctx.astype(bf16),
                    preferred_element_type=f32) + bw_ref[...]            # (Cout, HW)

    # --- conv_bn_dropout( cat([context, feats]) ) with split weights (no concat);
    #     Dropout2d is identity in eval mode.
    out = (jnp.dot(woc_ref[...].astype(bf16), ctx_w.astype(bf16),
                   preferred_element_type=f32)
           + jnp.dot(wox_ref[...].astype(bf16), x_bf,
                     preferred_element_type=f32))
    out = jnp.maximum(out * oscale_ref[...] + oshift_ref[...], 0.0)      # (Cout, HW)
    out_ref[0] = out.astype(out_ref.dtype)


def apnb_forward(params, feats_nchw, pool_mat_padded, s_valid, key_channels):
    """feats_nchw: (N, C, H, W) f32.  pool_mat_padded: (S_pad, H*W) f32 (zero-padded rows).
    Returns (out NCHW (N, Cout, H, W), context (N, Vc, H*W))."""
    N, C, H, W = feats_nchw.shape
    HW = H * W
    Vc = params["w_value"].shape[0]
    Kc = params["w_key"].shape[0]
    Cout = params["w_out_x"].shape[0]
    S_pad = pool_mat_padded.shape[0]

    # NCHW -> (N, C, HW): pure reshape, no transpose; HW lands on the lane axis.
    x3 = feats_nchw.reshape(N, C, HW)

    kernel = functools.partial(_apnb_fused_kernel,
                               s_valid=int(s_valid),
                               inv_sqrt_kc=float(key_channels) ** -0.5)

    def bcast(shape):
        return pl.BlockSpec(shape, lambda b: (0, 0))

    out3, ctx3 = pl.pallas_call(
        kernel,
        out_shape=(jax.ShapeDtypeStruct((N, Cout, HW), jnp.float32),
                   jax.ShapeDtypeStruct((N, Vc, HW), jnp.float32)),
        grid_spec=pltpu.PrefetchScalarGridSpec(
            num_scalar_prefetch=0,
            grid=(N,),
            in_specs=[
                pl.BlockSpec((1, C, HW), lambda b: (b, 0, 0)),   # x
                bcast((Vc, C)),                                  # w_value
                bcast((Vc, 1)),                                  # b_value
                bcast((Kc, C)),                                  # w_key
                bcast((Kc, 1)),                                  # key_scale (BN folded)
                bcast((Kc, 1)),                                  # key_shift (BN folded)
                bcast((S_pad, HW)),                              # pooling matrix
                bcast((Cout, Vc)),                               # w_W
                bcast((Cout, 1)),                                # b_W
                bcast((Cout, Cout)),                             # w_out_ctx
                bcast((Cout, C)),                                # w_out_x
                bcast((Cout, 1)),                                # out_scale (BN folded)
                bcast((Cout, 1)),                                # out_shift (BN folded)
            ],
            out_specs=[
                pl.BlockSpec((1, Cout, HW), lambda b: (b, 0, 0)),
                pl.BlockSpec((1, Vc, HW), lambda b: (b, 0, 0)),
            ],
        ),
        compiler_params=pltpu.CompilerParams(
            dimension_semantics=("parallel",),
        ),
    )(x3,
      params["w_value"], params["b_value"],
      params["w_key"], params["key_scale"], params["key_shift"],
      pool_mat_padded,
      params["w_W"], params["b_W"],
      params["w_out_ctx"], params["w_out_x"],
      params["out_scale"], params["out_shift"])

    return out3.reshape(N, Cout, H, W), ctx3


# ---------------------------- PSP pooling matrix -----------------------------

def _adaptive_pool_matrix_1d(in_size, out_size):
    P = np.zeros((out_size, in_size), np.float32)
    for i in range(out_size):
        s = (i * in_size) // out_size
        e = ((i + 1) * in_size + out_size - 1) // out_size   # ceil — matches PyTorch
        P[i, s:e] = 1.0 / (e - s)
    return P


def build_psp_matrix(H, W, sizes=(1, 3, 6, 8)):
    mats = []
    for s in sizes:
        Ph = _adaptive_pool_matrix_1d(H, s)
        Pw = _adaptive_pool_matrix_1d(W, s)
        mats.append(np.kron(Ph, Pw))        # (s*s, H*W), row-major (oh, ow)
    return np.concatenate(mats, axis=0)     # (S, H*W), S = sum(s*s) = 110


# -------------------------- pure-JAX f32 reference ---------------------------

def apnb_reference(params, feats_nchw, pool_mat_padded, s_valid, key_channels):
    hp = jax.lax.Precision.HIGHEST
    N, C, H, W = feats_nchw.shape
    x = feats_nchw.reshape(N, C, H * W)                      # (N, C, HW)

    def conv(x3, w, scale, shift, relu):
        y = jnp.einsum("oc,ncm->nom", w, x3, precision=hp) * scale + shift
        return jnp.maximum(y, 0.0) if relu else y

    value = conv(x, params["w_value"], 1.0, params["b_value"], False)
    kq = conv(x, params["w_key"], params["key_scale"], params["key_shift"], True)
    pm = pool_mat_padded[:s_valid]                           # (S, HW)
    value_psp = jnp.einsum("nvm,sm->nvs", value, pm, precision=hp)
    key_psp = jnp.einsum("nkm,sm->nks", kq, pm, precision=hp)
    sim = jnp.einsum("nkm,nks->nms", kq, key_psp, precision=hp)
    attn = jax.nn.softmax(sim * float(key_channels) ** -0.5, axis=-1)   # (N, HW, S)
    ctx = jnp.einsum("nms,nvs->nvm", attn, value_psp, precision=hp)     # (N, Vc, HW)
    ctx_w = conv(ctx, params["w_W"], 1.0, params["b_W"], False)
    out = (jnp.einsum("oc,ncm->nom", params["w_out_ctx"], ctx_w, precision=hp)
           + jnp.einsum("oc,ncm->nom", params["w_out_x"], x, precision=hp))
    out = jnp.maximum(out * params["out_scale"] + params["out_shift"], 0.0)
    return out.reshape(N, -1, H, W), ctx


# ----------------------------------- main ------------------------------------

if __name__ == "__main__":
    # Small shapes consistent with the module (stage out_channels must equal
    # in_channels for APNB's cat([context, feats]) to have 2*in_channels channels).
    N, C, H, W = 2, 16, 16, 16
    key_channels, value_channels, out_channels = 8, 16, 16
    psp_sizes = (1, 3, 6, 8)
    eps = 1e-5
    S_PAD = 128

    f32 = jnp.float32
    root = jax.random.PRNGKey(0)
    ks = jax.random.split(root, 12)

    # Deterministic synthetic parameters (channels-first (Cout, Cin) layout).
    w_value = (jax.random.normal(ks[0], (value_channels, C)) / np.sqrt(C)).astype(f32)
    b_value = (0.1 * jax.random.normal(ks[1], (value_channels, 1))).astype(f32)
    w_key = (jax.random.normal(ks[2], (key_channels, C)) / np.sqrt(C)).astype(f32)
    b_key = (0.1 * jax.random.normal(ks[3], (key_channels, 1))).astype(f32)
    gamma_k = (1.0 + 0.1 * jax.random.normal(ks[4], (key_channels, 1))).astype(f32)
    beta_k = (0.1 * jax.random.normal(ks[5], (key_channels, 1))).astype(f32)
    # BN (eval mode, fresh running stats mean=0/var=1) folded into per-channel affine.
    key_scale = gamma_k / jnp.sqrt(1.0 + eps)
    key_shift = b_key * key_scale + beta_k

    # W conv of the attention block is zero-initialized by the module.
    w_W = jnp.zeros((out_channels, value_channels), f32)
    b_W = jnp.zeros((out_channels, 1), f32)

    # Final conv over cat([context, feats]) given as two split weight slabs.
    fan_in = out_channels + C
    w_out_ctx = (jax.random.normal(ks[6], (out_channels, out_channels)) / np.sqrt(fan_in)).astype(f32)
    w_out_x = (jax.random.normal(ks[7], (out_channels, C)) / np.sqrt(fan_in)).astype(f32)
    b_out = (0.1 * jax.random.normal(ks[8], (out_channels, 1))).astype(f32)
    gamma_o = (1.0 + 0.1 * jax.random.normal(ks[9], (out_channels, 1))).astype(f32)
    beta_o = (0.1 * jax.random.normal(ks[10], (out_channels, 1))).astype(f32)
    out_scale = gamma_o / jnp.sqrt(1.0 + eps)
    out_shift = b_out * out_scale + beta_o
    # TODO(synk): Dropout2d(0.05) training-mode channel masking is not modeled
    # (identity in eval mode, which is what is implemented here).

    params = dict(
        w_value=w_value, b_value=b_value,
        w_key=w_key, key_scale=key_scale.astype(f32), key_shift=key_shift.astype(f32),
        w_W=w_W, b_W=b_W,
        w_out_ctx=w_out_ctx, w_out_x=w_out_x,
        out_scale=out_scale.astype(f32), out_shift=out_shift.astype(f32),
    )

    feats = jax.random.normal(ks[11], (N, C, H, W), f32)           # NCHW input

    pool_np = build_psp_matrix(H, W, psp_sizes)                    # (110, 256)
    s_valid = pool_np.shape[0]
    pool_padded_np = np.zeros((S_PAD, H * W), np.float32)
    pool_padded_np[:s_valid] = pool_np                             # pad pooled axis to 128
    pool_padded = jnp.asarray(pool_padded_np)

    out, ctx = apnb_forward(params, feats, pool_padded, s_valid, key_channels)
    out = jax.block_until_ready(out)
    ctx = jax.block_until_ready(ctx)

    ref_out, ref_ctx = apnb_reference(params, feats, pool_padded, s_valid, key_channels)
    # Tolerances account for bf16 MXU operands (f32 accumulation) vs the f32 reference.
    np.testing.assert_allclose(np.asarray(ctx), np.asarray(ref_ctx), rtol=2e-2, atol=2e-2)
    np.testing.assert_allclose(np.asarray(out), np.asarray(ref_out), rtol=2e-2, atol=2e-2)
    assert out.shape == (N, out_channels, H, W)

    print("KERNEL_OK")
</pallas_src>

<mosaic_0001>
module attributes {stable_mosaic.version = 11 : i64} {
  func.func @_apnb_fused_kernel(%arg0: i32, %arg1: memref<1x16x256xf32, #tpu.memory_space<vmem>>, %arg2: memref<16x16xf32, #tpu.memory_space<vmem>>, %arg3: memref<16x1xf32, #tpu.memory_space<vmem>>, %arg4: memref<8x16xf32, #tpu.memory_space<vmem>>, %arg5: memref<8x1xf32, #tpu.memory_space<vmem>>, %arg6: memref<8x1xf32, #tpu.memory_space<vmem>>, %arg7: memref<128x256xf32, #tpu.memory_space<vmem>>, %arg8: memref<16x16xf32, #tpu.memory_space<vmem>>, %arg9: memref<16x1xf32, #tpu.memory_space<vmem>>, %arg10: memref<16x16xf32, #tpu.memory_space<vmem>>, %arg11: memref<16x16xf32, #tpu.memory_space<vmem>>, %arg12: memref<16x1xf32, #tpu.memory_space<vmem>>, %arg13: memref<16x1xf32, #tpu.memory_space<vmem>>, %arg14: memref<1x16x256xf32, #tpu.memory_space<vmem>>, %arg15: memref<1x16x256xf32, #tpu.memory_space<vmem>>) attributes {dimension_semantics = [#tpu.dimension_semantics<parallel>], iteration_bounds = array<i64: 2>, scalar_prefetch = 0 : i64, scratch_operands = 0 : i64, tpu.core_type = #tpu.core_type<tc>, window_params = [{transform_indices = @transform_0, window_bounds = array<i64: 1, 16, 256>}, {pipeline_mode = #tpu.pipeline_mode<synchronous>, transform_indices = @transform_1, window_bounds = array<i64: 16, 16>}, {pipeline_mode = #tpu.pipeline_mode<synchronous>, transform_indices = @transform_2, window_bounds = array<i64: 16, 1>}, {pipeline_mode = #tpu.pipeline_mode<synchronous>, transform_indices = @transform_3, window_bounds = array<i64: 8, 16>}, {pipeline_mode = #tpu.pipeline_mode<synchronous>, transform_indices = @transform_4, window_bounds = array<i64: 8, 1>}, {pipeline_mode = #tpu.pipeline_mode<synchronous>, transform_indices = @transform_5, window_bounds = array<i64: 8, 1>}, {pipeline_mode = #tpu.pipeline_mode<synchronous>, transform_indices = @transform_6, window_bounds = array<i64: 128, 256>}, {pipeline_mode = #tpu.pipeline_mode<synchronous>, transform_indices = @transform_7, window_bounds = array<i64: 16, 16>}, {pipeline_mode = #tpu.pipeline_mode<synchronous>, transform_indices = @transform_8, window_bounds = array<i64: 16, 1>}, {pipeline_mode = #tpu.pipeline_mode<synchronous>, transform_indices = @transform_9, window_bounds = array<i64: 16, 16>}, {pipeline_mode = #tpu.pipeline_mode<synchronous>, transform_indices = @transform_10, window_bounds = array<i64: 16, 16>}, {pipeline_mode = #tpu.pipeline_mode<synchronous>, transform_indices = @transform_11, window_bounds = array<i64: 16, 1>}, {pipeline_mode = #tpu.pipeline_mode<synchronous>, transform_indices = @transform_12, window_bounds = array<i64: 16, 1>}, {transform_indices = @transform_13, window_bounds = array<i64: 1, 16, 256>}, {transform_indices = @transform_14, window_bounds = array<i64: 1, 16, 256>}]} {
    %c0 = arith.constant 0 : index
    %c0_0 = arith.constant 0 : index
    %c0_1 = arith.constant 0 : index
    %0 = vector.load %arg1[%c0, %c0_0, %c0_1] : memref<1x16x256xf32, #tpu.memory_space<vmem>>, vector<1x16x256xf32>
    %1 = vector.shape_cast %0 : vector<1x16x256xf32> to vector<16x256xf32>
    %2 = arith.truncf %1 : vector<16x256xf32> to vector<16x256xbf16>
    %c0_2 = arith.constant 0 : index
    %c0_3 = arith.constant 0 : index
    %3 = vector.load %arg2[%c0_2, %c0_3] : memref<16x16xf32, #tpu.memory_space<vmem>>, vector<16x16xf32>
    %4 = arith.truncf %3 : vector<16x16xf32> to vector<16x16xbf16>
    %cst = arith.constant dense<0.000000e+00> : vector<16x256xf32>
    %5 = tpu.matmul %4, %2, %cst {dimension_numbers = #tpu.dot_dimension_numbers<[1], [0], [0], [1], [0, 0, 1, 1], [], []>} : vector<16x16xbf16>, vector<16x256xbf16>, vector<16x256xf32> -> vector<16x256xf32>
    %c0_4 = arith.constant 0 : index
    %c0_5 = arith.constant 0 : index
    %6 = vector.load %arg3[%c0_4, %c0_5] : memref<16x1xf32, #tpu.memory_space<vmem>>, vector<16x1xf32>
    %7 = vector.broadcast %6 : vector<16x1xf32> to vector<16x256xf32>
    %8 = arith.addf %5, %7 : vector<16x256xf32>
    %c0_6 = arith.constant 0 : index
    %c0_7 = arith.constant 0 : index
    %9 = vector.load %arg4[%c0_6, %c0_7] : memref<8x16xf32, #tpu.memory_space<vmem>>, vector<8x16xf32>
    %10 = arith.truncf %9 : vector<8x16xf32> to vector<8x16xbf16>
    %cst_8 = arith.constant dense<0.000000e+00> : vector<8x256xf32>
    %11 = tpu.matmul %10, %2, %cst_8 {dimension_numbers = #tpu.dot_dimension_numbers<[1], [0], [0], [1], [0, 0, 1, 1], [], []>} : vector<8x16xbf16>, vector<16x256xbf16>, vector<8x256xf32> -> vector<8x256xf32>
    %c0_9 = arith.constant 0 : index
    %c0_10 = arith.constant 0 : index
    %12 = vector.load %arg5[%c0_9, %c0_10] : memref<8x1xf32, #tpu.memory_space<vmem>>, vector<8x1xf32>
    %13 = vector.broadcast %12 : vector<8x1xf32> to vector<8x256xf32>
    %14 = arith.mulf %11, %13 : vector<8x256xf32>
    %c0_11 = arith.constant 0 : index
    %c0_12 = arith.constant 0 : index
    %15 = vector.load %arg6[%c0_11, %c0_12] : memref<8x1xf32, #tpu.memory_space<vmem>>, vector<8x1xf32>
    %16 = vector.broadcast %15 : vector<8x1xf32> to vector<8x256xf32>
    %17 = arith.addf %14, %16 : vector<8x256xf32>
    %cst_13 = arith.constant 0.000000e+00 : f32
    %18 = vector.broadcast %cst_13 : f32 to vector<8x256xf32>
    %19 = arith.maximumf %17, %18 : vector<8x256xf32>
    %c0_14 = arith.constant 0 : index
    %c0_15 = arith.constant 0 : index
    %20 = vector.load %arg7[%c0_14, %c0_15] : memref<128x256xf32, #tpu.memory_space<vmem>>, vector<128x256xf32>
    %21 = arith.truncf %20 : vector<128x256xf32> to vector<128x256xbf16>
    %22 = arith.truncf %8 : vector<16x256xf32> to vector<16x256xbf16>
    %cst_16 = arith.constant dense<0.000000e+00> : vector<16x128xf32>
    %23 = tpu.matmul %22, %21, %cst_16 {dimension_numbers = #tpu.dot_dimension_numbers<[1], [1], [0], [0], [0, 0, 1, 0], [], []>} : vector<16x256xbf16>, vector<128x256xbf16>, vector<16x128xf32> -> vector<16x128xf32>
    %24 = arith.truncf %19 : vector<8x256xf32> to vector<8x256xbf16>
    %cst_17 = arith.constant dense<0.000000e+00> : vector<128x8xf32>
    %25 = tpu.matmul %21, %24, %cst_17 {dimension_numbers = #tpu.dot_dimension_numbers<[1], [1], [0], [0], [0, 0, 1, 0], [], []>} : vector<128x256xbf16>, vector<8x256xbf16>, vector<128x8xf32> -> vector<128x8xf32>
    %cst_18 = arith.constant dense<0.000000e+00> : vector<128x256xf32>
    %26 = tpu.matmul %25, %19, %cst_18 {dimension_numbers = #tpu.dot_dimension_numbers<[1], [0], [0], [1], [0, 0, 1, 1], [], []>} : vector<128x8xf32>, vector<8x256xf32>, vector<128x256xf32> -> vector<128x256xf32>
    %cst_19 = arith.constant 0.353553385 : f32
    %27 = vector.broadcast %cst_19 : f32 to vector<128x256xf32>
    %28 = arith.mulf %26, %27 : vector<128x256xf32>
    %29 = tpu.iota {dimensions = array<i32: 0>} : vector<128x256xi32>
    %c110_i32 = arith.constant 110 : i32
    %30 = vector.broadcast %c110_i32 : i32 to vector<128x256xi32>
    %31 = arith.cmpi slt, %29, %30 : vector<128x256xi32>
    %cst_20 = arith.constant -1.000000e+30 : f32
    %32 = vector.broadcast %cst_20 : f32 to vector<128x256xf32>
    %33 = arith.select %31, %28, %32 : vector<128x256xi1>, vector<128x256xf32>
    %cst_21 = arith.constant dense<0xFF800000> : vector<256xf32>
    %34 = vector.multi_reduction <maximumf>, %33, %cst_21 [0] : vector<128x256xf32> to vector<256xf32>
    %35 = vector.shape_cast %34 : vector<256xf32> to vector<1x256xf32>
    %36 = vector.broadcast %35 : vector<1x256xf32> to vector<128x256xf32>
    %37 = arith.subf %33, %36 : vector<128x256xf32>
    %38 = math.exp %37 : vector<128x256xf32>
    %cst_22 = arith.constant dense<0.000000e+00> : vector<256xf32>
    %39 = vector.multi_reduction <add>, %38, %cst_22 [0] : vector<128x256xf32> to vector<256xf32>
    %40 = vector.shape_cast %39 : vector<256xf32> to vector<1x256xf32>
    %41 = tpu.reciprocal %40 {approx = true} : vector<1x256xf32> -> vector<1x256xf32>
    %42 = vector.broadcast %41 : vector<1x256xf32> to vector<128x256xf32>
    %43 = arith.mulf %38, %42 : vector<128x256xf32>
    %44 = arith.truncf %23 : vector<16x128xf32> to vector<16x128xbf16>
    %45 = arith.truncf %43 : vector<128x256xf32> to vector<128x256xbf16>
    %cst_23 = arith.constant dense<0.000000e+00> : vector<16x256xf32>
    %46 = tpu.matmul %44, %45, %cst_23 {dimension_numbers = #tpu.dot_dimension_numbers<[1], [0], [0], [1], [0, 0, 1, 1], [], []>} : vector<16x128xbf16>, vector<128x256xbf16>, vector<16x256xf32> -> vector<16x256xf32>
    %c0_24 = arith.constant 0 : index
    %c0_25 = arith.constant 0 : index
    %c0_26 = arith.constant 0 : index
    %47 = vector.load %arg15[%c0_24, %c0_25, %c0_26] : memref<1x16x256xf32, #tpu.memory_space<vmem>>, vector<1x16x256xf32>
    %48 = vector.shape_cast %47 : vector<1x16x256xf32> to vector<16x256xf32>
    %49 = vector.shape_cast %46 : vector<16x256xf32> to vector<1x16x256xf32>
    tpu.vector_store %arg15[%c0_24, %c0_25, %c0_26], %49 {strides = array<i32>} : memref<1x16x256xf32, #tpu.memory_space<vmem>>, vector<1x16x256xf32>,
    %c0_27 = arith.constant 0 : index
    %c0_28 = arith.constant 0 : index
    %50 = vector.load %arg8[%c0_27, %c0_28] : memref<16x16xf32, #tpu.memory_space<vmem>>, vector<16x16xf32>
    %51 = arith.truncf %50 : vector<16x16xf32> to vector<16x16xbf16>
    %52 = arith.truncf %46 : vector<16x256xf32> to vector<16x256xbf16>
    %cst_29 = arith.constant dense<0.000000e+00> : vector<16x256xf32>
    %53 = tpu.matmul %51, %52, %cst_29 {dimension_numbers = #tpu.dot_dimension_numbers<[1], [0], [0], [1], [0, 0, 1, 1], [], []>} : vector<16x16xbf16>, vector<16x256xbf16>, vector<16x256xf32> -> vector<16x256xf32>
    %c0_30 = arith.constant 0 : index
    %c0_31 = arith.constant 0 : index
    %54 = vector.load %arg9[%c0_30, %c0_31] : memref<16x1xf32, #tpu.memory_space<vmem>>, vector<16x1xf32>
    %55 = vector.broadcast %54 : vector<16x1xf32> to vector<16x256xf32>
    %56 = arith.addf %53, %55 : vector<16x256xf32>
    %c0_32 = arith.constant 0 : index
    %c0_33 = arith.constant 0 : index
    %57 = vector.load %arg10[%c0_32, %c0_33] : memref<16x16xf32, #tpu.memory_space<vmem>>, vector<16x16xf32>
    %58 = arith.truncf %57 : vector<16x16xf32> to vector<16x16xbf16>
    %59 = arith.truncf %56 : vector<16x256xf32> to vector<16x256xbf16>
    %cst_34 = arith.constant dense<0.000000e+00> : vector<16x256xf32>
    %60 = tpu.matmul %58, %59, %cst_34 {dimension_numbers = #tpu.dot_dimension_numbers<[1], [0], [0], [1], [0, 0, 1, 1], [], []>} : vector<16x16xbf16>, vector<16x256xbf16>, vector<16x256xf32> -> vector<16x256xf32>
    %c0_35 = arith.constant 0 : index
    %c0_36 = arith.constant 0 : index
    %61 = vector.load %arg11[%c0_35, %c0_36] : memref<16x16xf32, #tpu.memory_space<vmem>>, vector<16x16xf32>
    %62 = arith.truncf %61 : vector<16x16xf32> to vector<16x16xbf16>
    %cst_37 = arith.constant dense<0.000000e+00> : vector<16x256xf32>
    %63 = tpu.matmul %62, %2, %cst_37 {dimension_numbers = #tpu.dot_dimension_numbers<[1], [0], [0], [1], [0, 0, 1, 1], [], []>} : vector<16x16xbf16>, vector<16x256xbf16>, vector<16x256xf32> -> vector<16x256xf32>
    %64 = arith.addf %60, %63 : vector<16x256xf32>
    %c0_38 = arith.constant 0 : index
    %c0_39 = arith.constant 0 : index
    %65 = vector.load %arg12[%c0_38, %c0_39] : memref<16x1xf32, #tpu.memory_space<vmem>>, vector<16x1xf32>
    %66 = vector.broadcast %65 : vector<16x1xf32> to vector<16x256xf32>
    %67 = arith.mulf %64, %66 : vector<16x256xf32>
    %c0_40 = arith.constant 0 : index
    %c0_41 = arith.constant 0 : index
    %68 = vector.load %arg13[%c0_40, %c0_41] : memref<16x1xf32, #tpu.memory_space<vmem>>, vector<16x1xf32>
    %69 = vector.broadcast %68 : vector<16x1xf32> to vector<16x256xf32>
    %70 = arith.addf %67, %69 : vector<16x256xf32>
    %cst_42 = arith.constant 0.000000e+00 : f32
    %71 = vector.broadcast %cst_42 : f32 to vector<16x256xf32>
    %72 = arith.maximumf %70, %71 : vector<16x256xf32>
    %c0_43 = arith.constant 0 : index
    %c0_44 = arith.constant 0 : index
    %c0_45 = arith.constant 0 : index
    %73 = vector.load %arg14[%c0_43, %c0_44, %c0_45] : memref<1x16x256xf32, #tpu.memory_space<vmem>>, vector<1x16x256xf32>
    %74 = vector.shape_cast %73 : vector<1x16x256xf32> to vector<16x256xf32>
    %75 = vector.shape_cast %72 : vector<16x256xf32> to vector<1x16x256xf32>
    tpu.vector_store %arg14[%c0_43, %c0_44, %c0_45], %75 {strides = array<i32>} : memref<1x16x256xf32, #tpu.memory_space<vmem>>, vector<1x16x256xf32>,
    return
  }
  func.func @transform_0(%arg0: i32) -> (i32, i32, i32) {
    %c0_i32 = arith.constant 0 : i32
    %c0_i32_0 = arith.constant 0 : i32
    %c0_i32_1 = arith.constant 0 : i32
    return %arg0, %c0_i32, %c0_i32_0 : i32, i32, i32
  }
  func.func @transform_1(%arg0: i32) -> (i32, i32) {
    %c0_i32 = arith.constant 0 : i32
    %c0_i32_0 = arith.constant 0 : i32
    %c0_i32_1 = arith.constant 0 : i32
    return %c0_i32, %c0_i32_0 : i32, i32
  }
  func.func @transform_2(%arg0: i32) -> (i32, i32) {
    %c0_i32 = arith.constant 0 : i32
    %c0_i32_0 = arith.constant 0 : i32
    %c0_i32_1 = arith.constant 0 : i32
    return %c0_i32, %c0_i32_0 : i32, i32
  }
  func.func @transform_3(%arg0: i32) -> (i32, i32) {
    %c0_i32 = arith.constant 0 : i32
    %c0_i32_0 = arith.constant 0 : i32
    %c0_i32_1 = arith.constant 0 : i32
    return %c0_i32, %c0_i32_0 : i32, i32
  }
  func.func @transform_4(%arg0: i32) -> (i32, i32) {
    %c0_i32 = arith.constant 0 : i32
    %c0_i32_0 = arith.constant 0 : i32
    %c0_i32_1 = arith.constant 0 : i32
    return %c0_i32, %c0_i32_0 : i32, i32
  }
  func.func @transform_5(%arg0: i32) -> (i32, i32) {
    %c0_i32 = arith.constant 0 : i32
    %c0_i32_0 = arith.constant 0 : i32
    %c0_i32_1 = arith.constant 0 : i32
    return %c0_i32, %c0_i32_0 : i32, i32
  }
  func.func @transform_6(%arg0: i32) -> (i32, i32) {
    %c0_i32 = arith.constant 0 : i32
    %c0_i32_0 = arith.constant 0 : i32
    %c0_i32_1 = arith.constant 0 : i32
    return %c0_i32, %c0_i32_0 : i32, i32
  }
  func.func @transform_7(%arg0: i32) -> (i32, i32) {
    %c0_i32 = arith.constant 0 : i32
    %c0_i32_0 = arith.constant 0 : i32
    %c0_i32_1 = arith.constant 0 : i32
    return %c0_i32, %c0_i32_0 : i32, i32
  }
  func.func @transform_8(%arg0: i32) -> (i32, i32) {
    %c0_i32 = arith.constant 0 : i32
    %c0_i32_0 = arith.constant 0 : i32
    %c0_i32_1 = arith.constant 0 : i32
    return %c0_i32, %c0_i32_0 : i32, i32
  }
  func.func @transform_9(%arg0: i32) -> (i32, i32) {
    %c0_i32 = arith.constant 0 : i32
    %c0_i32_0 = arith.constant 0 : i32
    %c0_i32_1 = arith.constant 0 : i32
    return %c0_i32, %c0_i32_0 : i32, i32
  }
  func.func @transform_10(%arg0: i32) -> (i32, i32) {
    %c0_i32 = arith.constant 0 : i32
    %c0_i32_0 = arith.constant 0 : i32
    %c0_i32_1 = arith.constant 0 : i32
    return %c0_i32, %c0_i32_0 : i32, i32
  }
  func.func @transform_11(%arg0: i32) -> (i32, i32) {
    %c0_i32 = arith.constant 0 : i32
    %c0_i32_0 = arith.constant 0 : i32
    %c0_i32_1 = arith.constant 0 : i32
    return %c0_i32, %c0_i32_0 : i32, i32
  }
  func.func @transform_12(%arg0: i32) -> (i32, i32) {
    %c0_i32 = arith.constant 0 : i32
    %c0_i32_0 = arith.constant 0 : i32
    %c0_i32_1 = arith.constant 0 : i32
    return %c0_i32, %c0_i32_0 : i32, i32
  }
  func.func @transform_13(%arg0: i32) -> (i32, i32, i32) {
    %c0_i32 = arith.constant 0 : i32
    %c0_i32_0 = arith.constant 0 : i32
    %c0_i32_1 = arith.constant 0 : i32
    return %arg0, %c0_i32, %c0_i32_0 : i32, i32, i32
  }
  func.func @transform_14(%arg0: i32) -> (i32, i32, i32) {
    %c0_i32 = arith.constant 0 : i32
    %c0_i32_0 = arith.constant 0 : i32
    %c0_i32_1 = arith.constant 0 : i32
    return %arg0, %c0_i32, %c0_i32_0 : i32, i32, i32
  }
}

</mosaic_0001>

<llo_original>
// kernel: tpu_custom_call.1
$region0: #{tpu_custom_call.1}
  #allocation0 [shape = 'u32[]', space=smem, size = 0x4, offset = 0x4, fixed_abs, tag = 'smem constant byte address 0x4 - core index']
  #allocation1 [shape = 'u32[144,128]{1,0:T(1,128)}', space=vmem, size = 0x12000, scoped, tag = 'internal scratch']
  %s0 = inlined_call_operand.vmem [shape: f32[2,16,256], index: 0, kind: input, shape index: {}]
  %s1 = inlined_call_operand.vmem [shape: f32[16,16], index: 1, kind: input, shape index: {}]
  %s2 = inlined_call_operand.vmem [shape: f32[16,1], index: 2, kind: input, shape index: {}]
  %s3 = inlined_call_operand.hbm [shape: f32[8,16], index: 3, kind: input, shape index: {}]
  %s4 = inlined_call_operand.vmem [shape: f32[8,1], index: 4, kind: input, shape index: {}]
  %s5 = inlined_call_operand.vmem [shape: f32[8,1], index: 5, kind: input, shape index: {}]
  %s6 = inlined_call_operand.hbm [shape: f32[128,256], index: 6, kind: input, shape index: {}]
  %s7 = inlined_call_operand.vmem [shape: f32[16,16], index: 7, kind: input, shape index: {}]
  %s8 = inlined_call_operand.vmem [shape: f32[16,1], index: 8, kind: input, shape index: {}]
  %s9 = inlined_call_operand.vmem [shape: f32[16,16], index: 9, kind: input, shape index: {}]
  %s10 = inlined_call_operand.hbm [shape: f32[16,16], index: 10, kind: input, shape index: {}]
  %s11 = inlined_call_operand.vmem [shape: f32[16,1], index: 11, kind: input, shape index: {}]
  %s12 = inlined_call_operand.vmem [shape: f32[16,1], index: 12, kind: input, shape index: {}]
  %s13 = inlined_call_operand.hbm [shape: f32[2,16,256], index: 13, kind: output, shape index: {0}]
  %s14 = inlined_call_operand.hbm [shape: f32[2,16,256], index: 14, kind: output, shape index: {1}]
  %15 = xla_tuple %s13, %s14
  %s16 = sld [smem:[#allocation0]]
  $region105: #{tpu_custom_call.1} parent=0
    _
  %s18 = ssub.s32 1, %s16
  %s19 = scalar_select 0, %s18, %s16
  $region1: #{tpu_custom_call.1} parent=0
    #allocation2 [shape = 'u8[4096]{0}', space=vmem, size = 0x1000, scoped, tag = 'input window, operand 3, single buffered']
    #allocation3 [shape = 's32[2]{0}', space=sflag, size = 0x8, scoped, tag = 'scoped memory for tpu_custom_call.1']
    #allocation4 [shape = 's32[2]{0}', space=sflag, size = 0x8, scoped, tag = 'scoped memory for tpu_custom_call.1']
    #allocation5 [shape = 'u8[131072]{0}', space=vmem, size = 0x20000, scoped, tag = 'input window, operand 6, single buffered']
    #allocation6 [shape = 's32[1]{0}', space=sflag, size = 0x4, scoped, tag = 'scoped memory for tpu_custom_call.1']
    #allocation7 [shape = 'u8[8192]{0}', space=vmem, size = 0x2000, scoped, tag = 'input window, operand 10, single buffered']
    #allocation8 [shape = 'u8[32768]{0}', space=vmem, size = 0x8000, scoped, tag = 'output window, operand 0']
    #allocation9 [shape = 'u8[32768]{0}', space=vmem, size = 0x8000, scoped, tag = 'output window, operand 1']
    #allocation10 [shape = 's32[2]{0}', space=sflag, size = 0x8, scoped, tag = 'scoped memory for tpu_custom_call.1']
    %20 = vsyncpa [#allocation3], 0
    %21 = vsyncpa [#allocation6], 0
    %22 = vsyncpa [#allocation4], 0
    %s23 = scalar_lea.sflag [#allocation4], 1
    %24 = vsyncpa %s23, 0
    %25 = vsyncpa [#allocation10], 0
    %s26 = scalar_lea.sflag [#allocation10], 1
    %27 = vsyncpa %s26, 0
    loop: start=0, step=1, limit=4
    $region2: #{tpu_custom_call.1} parent=1 // loop_pre_header
      _
    $region3: #{tpu_custom_call.1} parent=1 // loop_header
      %s29 = sphi 0, %s33
      %p30 = scmp.ge.s32.totalorder %s29, 4
      %s39 = sphi 0, %s41
      %s42 = sphi 0, %s39
      %s43 = sphi 0, %s42
      %s59 = sphi 0, %s43
      %s63 = sphi 0, %s63
      %s65 = sphi 0, %s63
      %s66 = sphi 0, %s65
      %s80 = sphi 0, %s66
      %s84 = sphi 0, %s84
      %s86 = sphi 0, %s84
      %s87 = sphi 0, %s86
      %s101 = sphi 0, %s87
      %s105 = sphi 0, %s105
      %s107 = sphi 0, %s105
      %s108 = sphi 0, %s107
      %s122 = sphi 0, %s108
      %s126 = sphi 0, %s126
      %s128 = sphi 0, %s126
      %s129 = sphi 0, %s128
      %s143 = sphi 0, %s129
      %s147 = sphi 0, %s147
      %s149 = sphi 0, %s147
      %s150 = sphi 0, %s149
      %s164 = sphi 0, %s150
      %s168 = sphi 0, %s168
      %s170 = sphi 0, %s168
      %s171 = sphi 0, %s170
      %s185 = sphi 0, %s171
      %s189 = sphi 0, %s189
      %s191 = sphi 0, %s189
      %s192 = sphi 0, %s191
      %s206 = sphi 0, %s192
      %s210 = sphi 0, %s210
      %s212 = sphi 0, %s210
      %s213 = sphi 0, %s212
      %s227 = sphi 0, %s213
      %s231 = sphi 0, %s231
      %s233 = sphi 0, %s231
      %s234 = sphi 0, %s233
      %s248 = sphi 0, %s234
      %s252 = sphi 0, %s252
      %s254 = sphi 0, %s252
      %s255 = sphi 0, %s254
      %s269 = sphi 0, %s255
      %s273 = sphi 0, %s273
      %s275 = sphi 0, %s273
      %s276 = sphi 0, %s275
      %s290 = sphi 0, %s276
      %s294 = sphi 0, %s294
      %s296 = sphi 0, %s294
      %s297 = sphi 0, %s296
      %s311 = sphi 0, %s297
      %s317 = sphi 0, %s319
      %s320 = sphi 0, %s317
      %s321 = sphi 0, %s320
      %s337 = sphi 0, %s321
      %s343 = sphi 0, %s345
      %s346 = sphi 0, %s343
      %s347 = sphi 0, %s346
      %s363 = sphi 0, %s347
    $region4: #{tpu_custom_call.1} parent=1 // loop_header_branch
      %32 = sbr.rel (%p30) target = $region8
    $region5: #{tpu_custom_call.1} parent=1 // loop_body
      %s34 = ssub.s32 %s29, 1
      %s35 = ssub.s32 %s29, 2
      %s36 = sadd.s32 %s29, 1
      %s37 = ssub.s32 %s29, %s36
      %p38 = scmp.eq.s32.totalorder %s37, 0
      %s40 = sadd.s32 %s39, 1
      %s41 = scalar_select %p38, %s39, %s40
      %p44 = pneg %p38
      %p45 = scmp.eq.s32.totalorder %s29, 1
      %p46 = por %p44, %p45
      %p47 = scmp.ne.s32.totalorder %s39, %s42
      %p48 = scmp.eq.s32.totalorder %s29, 0
      %p49 = por %p47, %p48
      %p50 = scmp.ne.s32.totalorder %s39, %s42
      %p51 = scmp.eq.s32.totalorder %s34, 1
      %p52 = por %p50, %p51
      %p53 = scmp.ne.s32.totalorder %s42, %s43
      %p54 = scmp.eq.s32.totalorder %s34, 0
      %p55 = por %p53, %p54
      %p56 = scmp.ne.s32.totalorder %s42, %s43
      %p57 = scmp.eq.s32.totalorder %s35, 1
      %p58 = por %p56, %p57
      %p60 = scmp.ne.s32.totalorder %s43, %s59
      %p61 = scmp.eq.s32.totalorder %s35, 0
      %p62 = por %p60, %p61
      %s64 = sadd.s32 %s63, 1
      %p67 = scmp.eq.s32.totalorder %s29, 1
      %p68 = scmp.ne.s32.totalorder %s63, %s65
      %p69 = scmp.eq.s32.totalorder %s29, 0
      %p70 = por %p68, %p69
      %p71 = scmp.ne.s32.totalorder %s63, %s65
      %p72 = scmp.eq.s32.totalorder %s34, 1
      %p73 = por %p71, %p72
      %p74 = scmp.ne.s32.totalorder %s65, %s66
      %p75 = scmp.eq.s32.totalorder %s34, 0
      %p76 = por %p74, %p75
      %p77 = scmp.ne.s32.totalorder %s65, %s66
      %p78 = scmp.eq.s32.totalorder %s35, 1
      %p79 = por %p77, %p78
      %p81 = scmp.ne.s32.totalorder %s66, %s80
      %p82 = scmp.eq.s32.totalorder %s35, 0
      %p83 = por %p81, %p82
      %s85 = sadd.s32 %s84, 1
      %p88 = scmp.eq.s32.totalorder %s29, 1
      %p89 = scmp.ne.s32.totalorder %s84, %s86
      %p90 = scmp.eq.s32.totalorder %s29, 0
      %p91 = por %p89, %p90
      %p92 = scmp.ne.s32.totalorder %s84, %s86
      %p93 = scmp.eq.s32.totalorder %s34, 1
      %p94 = por %p92, %p93
      %p95 = scmp.ne.s32.totalorder %s86, %s87
      %p96 = scmp.eq.s32.totalorder %s34, 0
      %p97 = por %p95, %p96
      %p98 = scmp.ne.s32.totalorder %s86, %s87
      %p99 = scmp.eq.s32.totalorder %s35, 1
      %p100 = por %p98, %p99
      %p102 = scmp.ne.s32.totalorder %s87, %s101
      %p103 = scmp.eq.s32.totalorder %s35, 0
      %p104 = por %p102, %p103
      %s106 = sadd.s32 %s105, 1
      %p109 = scmp.eq.s32.totalorder %s29, 1
      %p110 = scmp.ne.s32.totalorder %s105, %s107
      %p111 = scmp.eq.s32.totalorder %s29, 0
      %p112 = por %p110, %p111
      %p113 = scmp.ne.s32.totalorder %s105, %s107
      %p114 = scmp.eq.s32.totalorder %s34, 1
      %p115 = por %p113, %p114
      %p116 = scmp.ne.s32.totalorder %s107, %s108
      %p117 = scmp.eq.s32.totalorder %s34, 0
      %p118 = por %p116, %p117
      %p119 = scmp.ne.s32.totalorder %s107, %s108
      %p120 = scmp.eq.s32.totalorder %s35, 1
      %p121 = por %p119, %p120
      %p123 = scmp.ne.s32.totalorder %s108, %s122
      %p124 = scmp.eq.s32.totalorder %s35, 0
      %p125 = por %p123, %p124
      %s127 = sadd.s32 %s126, 1
      %p130 = scmp.eq.s32.totalorder %s29, 1
      %p131 = scmp.ne.s32.totalorder %s126, %s128
      %p132 = scmp.eq.s32.totalorder %s29, 0
      %p133 = por %p131, %p132
      %p134 = scmp.ne.s32.totalorder %s126, %s128
      %p135 = scmp.eq.s32.totalorder %s34, 1
      %p136 = por %p134, %p135
      %p137 = scmp.ne.s32.totalorder %s128, %s129
      %p138 = scmp.eq.s32.totalorder %s34, 0
      %p139 = por %p137, %p138
      %p140 = scmp.ne.s32.totalorder %s128, %s129
      %p141 = scmp.eq.s32.totalorder %s35, 1
      %p142 = por %p140, %p141
      %p144 = scmp.ne.s32.totalorder %s129, %s143
      %p145 = scmp.eq.s32.totalorder %s35, 0
      %p146 = por %p144, %p145
      %s148 = sadd.s32 %s147, 1
      %p151 = scmp.eq.s32.totalorder %s29, 1
      %p152 = scmp.ne.s32.totalorder %s147, %s149
      %p153 = scmp.eq.s32.totalorder %s29, 0
      %p154 = por %p152, %p153
      %p155 = scmp.ne.s32.totalorder %s147, %s149
      %p156 = scmp.eq.s32.totalorder %s34, 1
      %p157 = por %p155, %p156
      %p158 = scmp.ne.s32.totalorder %s149, %s150
      %p159 = scmp.eq.s32.totalorder %s34, 0
      %p160 = por %p158, %p159
      %p161 = scmp.ne.s32.totalorder %s149, %s150
      %p162 = scmp.eq.s32.totalorder %s35, 1
      %p163 = por %p161, %p162
      %p165 = scmp.ne.s32.totalorder %s150, %s164
      %p166 = scmp.eq.s32.totalorder %s35, 0
      %p167 = por %p165, %p166
      %s169 = sadd.s32 %s168, 1
      %p172 = scmp.eq.s32.totalorder %s29, 1
      %p173 = scmp.ne.s32.totalorder %s168, %s170
      %p174 = scmp.eq.s32.totalorder %s29, 0
      %p175 = por %p173, %p174
      %p176 = scmp.ne.s32.totalorder %s168, %s170
      %p177 = scmp.eq.s32.totalorder %s34, 1
      %p178 = por %p176, %p177
      %p179 = scmp.ne.s32.totalorder %s170, %s171
      %p180 = scmp.eq.s32.totalorder %s34, 0
      %p181 = por %p179, %p180
      %p182 = scmp.ne.s32.totalorder %s170, %s171
      %p183 = scmp.eq.s32.totalorder %s35, 1
      %p184 = por %p182, %p183
      %p186 = scmp.ne.s32.totalorder %s171, %s185
      %p187 = scmp.eq.s32.totalorder %s35, 0
      %p188 = por %p186, %p187
      %s190 = sadd.s32 %s189, 1
      %p193 = scmp.eq.s32.totalorder %s29, 1
      %p194 = scmp.ne.s32.totalorder %s189, %s191
      %p195 = scmp.eq.s32.totalorder %s29, 0
      %p196 = por %p194, %p195
      %p197 = scmp.ne.s32.totalorder %s189, %s191
      %p198 = scmp.eq.s32.totalorder %s34, 1
      %p199 = por %p197, %p198
      %p200 = scmp.ne.s32.totalorder %s191, %s192
      %p201 = scmp.eq.s32.totalorder %s34, 0
      %p202 = por %p200, %p201
      %p203 = scmp.ne.s32.totalorder %s191, %s192
      %p204 = scmp.eq.s32.totalorder %s35, 1
      %p205 = por %p203, %p204
      %p207 = scmp.ne.s32.totalorder %s192, %s206
      %p208 = scmp.eq.s32.totalorder %s35, 0
      %p209 = por %p207, %p208
      %s211 = sadd.s32 %s210, 1
      %p214 = scmp.eq.s32.totalorder %s29, 1
      %p215 = scmp.ne.s32.totalorder %s210, %s212
      %p216 = scmp.eq.s32.totalorder %s29, 0
      %p217 = por %p215, %p216
      %p218 = scmp.ne.s32.totalorder %s210, %s212
      %p219 = scmp.eq.s32.totalorder %s34, 1
      %p220 = por %p218, %p219
      %p221 = scmp.ne.s32.totalorder %s212, %s213
      %p222 = scmp.eq.s32.totalorder %s34, 0
      %p223 = por %p221, %p222
      %p224 = scmp.ne.s32.totalorder %s212, %s213
      %p225 = scmp.eq.s32.totalorder %s35, 1
      %p226 = por %p224, %p225
      %p228 = scmp.ne.s32.totalorder %s213, %s227
      %p229 = scmp.eq.s32.totalorder %s35, 0
      %p230 = por %p228, %p229
      %s232 = sadd.s32 %s231, 1
      %p235 = scmp.eq.s32.totalorder %s29, 1
      %p236 = scmp.ne.s32.totalorder %s231, %s233
      %p237 = scmp.eq.s32.totalorder %s29, 0
      %p238 = por %p236, %p237
      %p239 = scmp.ne.s32.totalorder %s231, %s233
      %p240 = scmp.eq.s32.totalorder %s34, 1
      %p241 = por %p239, %p240
      %p242 = scmp.ne.s32.totalorder %s233, %s234
      %p243 = scmp.eq.s32.totalorder %s34, 0
      %p244 = por %p242, %p243
      %p245 = scmp.ne.s32.totalorder %s233, %s234
      %p246 = scmp.eq.s32.totalorder %s35, 1
      %p247 = por %p245, %p246
      %p249 = scmp.ne.s32.totalorder %s234, %s248
      %p250 = scmp.eq.s32.totalorder %s35, 0
      %p251 = por %p249, %p250
      %s253 = sadd.s32 %s252, 1
      %p256 = scmp.eq.s32.totalorder %s29, 1
      %p257 = scmp.ne.s32.totalorder %s252, %s254
      %p258 = scmp.eq.s32.totalorder %s29, 0
      %p259 = por %p257, %p258
      %p260 = scmp.ne.s32.totalorder %s252, %s254
      %p261 = scmp.eq.s32.totalorder %s34, 1
      %p262 = por %p260, %p261
      %p263 = scmp.ne.s32.totalorder %s254, %s255
      %p264 = scmp.eq.s32.totalorder %s34, 0
      %p265 = por %p263, %p264
      %p266 = scmp.ne.s32.totalorder %s254, %s255
      %p267 = scmp.eq.s32.totalorder %s35, 1
      %p268 = por %p266, %p267
      %p270 = scmp.ne.s32.totalorder %s255, %s269
      %p271 = scmp.eq.s32.totalorder %s35, 0
      %p272 = por %p270, %p271
      %s274 = sadd.s32 %s273, 1
      %p277 = scmp.eq.s32.totalorder %s29, 1
      %p278 = scmp.ne.s32.totalorder %s273, %s275
      %p279 = scmp.eq.s32.totalorder %s29, 0
      %p280 = por %p278, %p279
      %p281 = scmp.ne.s32.totalorder %s273, %s275
      %p282 = scmp.eq.s32.totalorder %s34, 1
      %p283 = por %p281, %p282
      %p284 = scmp.ne.s32.totalorder %s275, %s276
      %p285 = scmp.eq.s32.totalorder %s34, 0
      %p286 = por %p284, %p285
      %p287 = scmp.ne.s32.totalorder %s275, %s276
      %p288 = scmp.eq.s32.totalorder %s35, 1
      %p289 = por %p287, %p288
      %p291 = scmp.ne.s32.totalorder %s276, %s290
      %p292 = scmp.eq.s32.totalorder %s35, 0
      %p293 = por %p291, %p292
      %s295 = sadd.s32 %s294, 1
      %p298 = scmp.eq.s32.totalorder %s29, 1
      %p299 = scmp.ne.s32.totalorder %s294, %s296
      %p300 = scmp.eq.s32.totalorder %s29, 0
      %p301 = por %p299, %p300
      %p302 = scmp.ne.s32.totalorder %s294, %s296
      %p303 = scmp.eq.s32.totalorder %s34, 1
      %p304 = por %p302, %p303
      %p305 = scmp.ne.s32.totalorder %s296, %s297
      %p306 = scmp.eq.s32.totalorder %s34, 0
      %p307 = por %p305, %p306
      %p308 = scmp.ne.s32.totalorder %s296, %s297
      %p309 = scmp.eq.s32.totalorder %s35, 1
      %p310 = por %p308, %p309
      %p312 = scmp.ne.s32.totalorder %s297, %s311
      %p313 = scmp.eq.s32.totalorder %s35, 0
      %p314 = por %p312, %p313
      %s315 = ssub.s32 %s29, %s36
      %p316 = scmp.eq.s32.totalorder %s315, 0
      %s318 = sadd.s32 %s317, 1
      %s319 = scalar_select %p316, %s317, %s318
      %p322 = pneg %p316
      %p323 = scmp.eq.s32.totalorder %s29, 1
      %p324 = por %p322, %p323
      %p325 = scmp.ne.s32.totalorder %s317, %s320
      %p326 = scmp.eq.s32.totalorder %s29, 0
      %p327 = por %p325, %p326
      %p328 = scmp.ne.s32.totalorder %s317, %s320
      %p329 = scmp.eq.s32.totalorder %s34, 1
      %p330 = por %p328, %p329
      %p331 = scmp.ne.s32.totalorder %s320, %s321
      %p332 = scmp.eq.s32.totalorder %s34, 0
      %p333 = por %p331, %p332
      %p334 = scmp.ne.s32.totalorder %s320, %s321
      %p335 = scmp.eq.s32.totalorder %s35, 1
      %p336 = por %p334, %p335
      %p338 = scmp.ne.s32.totalorder %s321, %s337
      %p339 = scmp.eq.s32.totalorder %s35, 0
      %p340 = por %p338, %p339
      %s341 = ssub.s32 %s29, %s36
      %p342 = scmp.eq.s32.totalorder %s341, 0
      %s344 = sadd.s32 %s343, 1
      %s345 = scalar_select %p342, %s343, %s344
      %p348 = pneg %p342
      %p349 = scmp.eq.s32.totalorder %s29, 1
      %p350 = por %p348, %p349
      %p351 = scmp.ne.s32.totalorder %s343, %s346
      %p352 = scmp.eq.s32.totalorder %s29, 0
      %p353 = por %p351, %p352
      %p354 = scmp.ne.s32.totalorder %s343, %s346
      %p355 = scmp.eq.s32.totalorder %s34, 1
      %p356 = por %p354, %p355
      %p357 = scmp.ne.s32.totalorder %s346, %s347
      %p358 = scmp.eq.s32.totalorder %s34, 0
      %p359 = por %p357, %p358
      %p360 = scmp.ne.s32.totalorder %s346, %s347
      %p361 = scmp.eq.s32.totalorder %s35, 1
      %p362 = por %p360, %p361
      %p364 = scmp.ne.s32.totalorder %s347, %s363
      %p365 = scmp.eq.s32.totalorder %s35, 0
      %p366 = por %p364, %p365
      %p367 = scmp.le.s32.totalorder 1, %s29
      %p368 = scmp.lt.s32.totalorder %s29, 3
      %p369 = pnand %p367, %p368
      %p370 = pneg %p369
      // Predicated region
      $region9: #{tpu_custom_call.1} parent=5 // pred_check
        _
      $region10: #{tpu_custom_call.1} parent=5 // pred_check_branch
        %372 = sbr.rel (%p369) target = $region12
      $region11: #{tpu_custom_call.1} parent=5 // pred_region
        %s373 = ssub.s32 %s29, 1
        // Predicated region
        $region13: #{tpu_custom_call.1} parent=11 // pred_check
          %p374 = pneg %p76
        $region14: #{tpu_custom_call.1} parent=11 // pred_check_branch
          %376 = sbr.rel (%p374) target = $region16
        $region15: #{tpu_custom_call.1} parent=11 // pred_region
          _
        $region16: #{tpu_custom_call.1} parent=11 // pred_fallthru
          _
        // Predicated region
        $region17: #{tpu_custom_call.1} parent=11 // pred_check
          %p377 = pneg %p97
        $region18: #{tpu_custom_call.1} parent=11 // pred_check_branch
          %379 = sbr.rel (%p377) target = $region20
        $region19: #{tpu_custom_call.1} parent=11 // pred_region
          _
        $region20: #{tpu_custom_call.1} parent=11 // pred_fallthru
          _
        // Predicated region
        $region21: #{tpu_custom_call.1} parent=11 // pred_check
          %p380 = pneg %p118
        $region22: #{tpu_custom_call.1} parent=11 // pred_check_branch
          %382 = sbr.rel (%p380) target = $region24
        $region23: #{tpu_custom_call.1} parent=11 // pred_region
          %s384 = ssub.s32 128, 128
          %385 = vsyncadd [#allocation3], %s384
          %s387 = sshll.u32 [#allocation2], 4
          %s388 = int_to_ptr.vmem [resolvable:$true] %s387
          %390 = dma.hbm_to_vmem [thread:$0]  %s3, 128, %s388, [#allocation3]
        $region24: #{tpu_custom_call.1} parent=11 // pred_fallthru
          _
        // Predicated region
        $region25: #{tpu_custom_call.1} parent=11 // pred_check
          %p391 = pneg %p139
        $region26: #{tpu_custom_call.1} parent=11 // pred_check_branch
          %393 = sbr.rel (%p391) target = $region28
        $region27: #{tpu_custom_call.1} parent=11 // pred_region
          _
        $region28: #{tpu_custom_call.1} parent=11 // pred_fallthru
          _
        // Predicated region
        $region29: #{tpu_custom_call.1} parent=11 // pred_check
          %p394 = pneg %p160
        $region30: #{tpu_custom_call.1} parent=11 // pred_check_branch
          %396 = sbr.rel (%p394) target = $region32
        $region31: #{tpu_custom_call.1} parent=11 // pred_region
          _
        $region32: #{tpu_custom_call.1} parent=11 // pred_fallthru
          _
        // Predicated region
        $region33: #{tpu_custom_call.1} parent=11 // pred_check
          %p397 = pneg %p181
        $region34: #{tpu_custom_call.1} parent=11 // pred_check_branch
          %399 = sbr.rel (%p397) target = $region36
        $region35: #{tpu_custom_call.1} parent=11 // pred_region
          %s401 = ssub.s32 4096, 4096
          %402 = vsyncadd [#allocation6], %s401
          %s403 = sshll.u32 [#allocation5], 4
          %s404 = int_to_ptr.vmem [resolvable:$true] %s403
          %409 = dma.hbm_to_vmem [thread:$0]  %s6, 4096, %s404, [#allocation6], 256, 256, 16
        $region36: #{tpu_custom_call.1} parent=11 // pred_fallthru
          _
        // Predicated region
        $region37: #{tpu_custom_call.1} parent=11 // pred_check
          %p410 = pneg %p202
        $region38: #{tpu_custom_call.1} parent=11 // pred_check_branch
          %412 = sbr.rel (%p410) target = $region40
        $region39: #{tpu_custom_call.1} parent=11 // pred_region
          _
        $region40: #{tpu_custom_call.1} parent=11 // pred_fallthru
          _
        // Predicated region
        $region41: #{tpu_custom_call.1} parent=11 // pred_check
          %p413 = pneg %p223
        $region42: #{tpu_custom_call.1} parent=11 // pred_check_branch
          %415 = sbr.rel (%p413) target = $region44
        $region43: #{tpu_custom_call.1} parent=11 // pred_region
          _
        $region44: #{tpu_custom_call.1} parent=11 // pred_fallthru
          _
        // Predicated region
        $region45: #{tpu_custom_call.1} parent=11 // pred_check
          %p416 = pneg %p244
        $region46: #{tpu_custom_call.1} parent=11 // pred_check_branch
          %418 = sbr.rel (%p416) target = $region48
        $region47: #{tpu_custom_call.1} parent=11 // pred_region
          _
        $region48: #{tpu_custom_call.1} parent=11 // pred_fallthru
          _
        // Predicated region
        $region49: #{tpu_custom_call.1} parent=11 // pred_check
          %p419 = pneg %p265
        $region50: #{tpu_custom_call.1} parent=11 // pred_check_branch
          %421 = sbr.rel (%p419) target = $region52
        $region51: #{tpu_custom_call.1} parent=11 // pred_region
          %s423 = ssub.s32 256, 256
          %424 = vsyncadd [#allocation6], %s423
          %s425 = sshll.u32 [#allocation7], 4
          %s426 = int_to_ptr.vmem [resolvable:$true] %s425
          %431 = dma.hbm_to_vmem [thread:$0]  %s10, 256, %s426, [#allocation6], 128, 128, 8
        $region52: #{tpu_custom_call.1} parent=11 // pred_fallthru
          _
        // Predicated region
        $region53: #{tpu_custom_call.1} parent=11 // pred_check
          %p432 = pneg %p286
        $region54: #{tpu_custom_call.1} parent=11 // pred_check_branch
          %434 = sbr.rel (%p432) target = $region56
        $region55: #{tpu_custom_call.1} parent=11 // pred_region
          _
        $region56: #{tpu_custom_call.1} parent=11 // pred_fallthru
          _
        // Predicated region
        $region57: #{tpu_custom_call.1} parent=11 // pred_check
          %p435 = pneg %p307
        $region58: #{tpu_custom_call.1} parent=11 // pred_check_branch
          %437 = sbr.rel (%p435) target = $region60
        $region59: #{tpu_custom_call.1} parent=11 // pred_region
          _
        $region60: #{tpu_custom_call.1} parent=11 // pred_fallthru
          _
      $region12: #{tpu_custom_call.1} parent=5 // pred_fallthru
        _
      %p438 = scmp.lt.s32.totalorder %s29, 2
      // Predicated region
      $region61: #{tpu_custom_call.1} parent=5 // pred_check
        %p439 = pneg %p438
      $region62: #{tpu_custom_call.1} parent=5 // pred_check_branch
        %441 = sbr.rel (%p439) target = $region64
      $region63: #{tpu_custom_call.1} parent=5 // pred_region
        // Predicated region
        $region65: #{tpu_custom_call.1} parent=63 // pred_check
          %p442 = pneg %p49
        $region66: #{tpu_custom_call.1} parent=63 // pred_check_branch
          %444 = sbr.rel (%p442) target = $region68
        $region67: #{tpu_custom_call.1} parent=63 // pred_region
          %p445 = scmp.lt.s32.totalorder %s29, 1
          %s446 = scalar_select %p445, %s29, 1
          %s447 = smul.addr %s446, 4
          %s448 = smul.addr %s447, 8
          %s449 = scalar_lea.vmem %s0, %s448
        $region68: #{tpu_custom_call.1} parent=63 // pred_fallthru
          _
      $region64: #{tpu_custom_call.1} parent=5 // pred_fallthru
        _
      %p450 = scmp.le.s32.totalorder 1, %s29
      %p451 = scmp.lt.s32.totalorder %s29, 3
      %p452 = pnand %p450, %p451
      %p453 = pneg %p452
      // Predicated region
      $region69: #{tpu_custom_call.1} parent=5 // pred_check
        _
      $region70: #{tpu_custom_call.1} parent=5 // pred_check_branch
        %455 = sbr.rel (%p452) target = $region72
      $region71: #{tpu_custom_call.1} parent=5 // pred_region
        %s456 = ssub.s32 %s29, 1
        // Predicated region
        $region73: #{tpu_custom_call.1} parent=71 // pred_check
          %p457 = pneg %p118
        $region74: #{tpu_custom_call.1} parent=71 // pred_check_branch
          %459 = sbr.rel (%p457) target = $region76
        $region75: #{tpu_custom_call.1} parent=71 // pred_region
          %460 = dma.done [#allocation3], 128
        $region76: #{tpu_custom_call.1} parent=71 // pred_fallthru
          _
        // Predicated region
        $region77: #{tpu_custom_call.1} parent=71 // pred_check
          %p461 = pneg %p181
        $region78: #{tpu_custom_call.1} parent=71 // pred_check_branch
          %463 = sbr.rel (%p461) target = $region80
        $region79: #{tpu_custom_call.1} parent=71 // pred_region
          %464 = dma.done [#allocation6], 4096
        $region80: #{tpu_custom_call.1} parent=71 // pred_fallthru
          _
        // Predicated region
        $region81: #{tpu_custom_call.1} parent=71 // pred_check
          %p465 = pneg %p265
        $region82: #{tpu_custom_call.1} parent=71 // pred_check_branch
          %467 = sbr.rel (%p465) target = $region84
        $region83: #{tpu_custom_call.1} parent=71 // pred_region
          %468 = dma.done [#allocation6], 256
        $region84: #{tpu_custom_call.1} parent=71 // pred_fallthru
          _
        %p469 = scmp.lt.s32.totalorder %s34, 1
        %s470 = scalar_select %p469, %s34, 1
        %s471 = smul.addr %s470, 4
        %s472 = smul.addr %s471, 8
        %s473 = scalar_lea.vmem %s0, %s472
        %p474 = pneg %p55
        %p475 = pneg %p52
        %p476 = pneg %p76
        %p477 = pneg %p73
        %p478 = pneg %p97
        %p479 = pneg %p94
        %p480 = pneg %p118
        %p481 = pneg %p115
        %p482 = pneg %p139
        %p483 = pneg %p136
        %p484 = pneg %p160
        %p485 = pneg %p157
        %p486 = pneg %p181
        %p487 = pneg %p178
        %p488 = pneg %p202
        %p489 = pneg %p199
        %p490 = pneg %p223
        %p491 = pneg %p220
        %p492 = pneg %p244
        %p493 = pneg %p241
        %p494 = pneg %p265
        %p495 = pneg %p262
        %p496 = pneg %p286
        %p497 = pneg %p283
        %p498 = pneg %p307
        %p499 = pneg %p304
        %p500 = pneg %p333
        %p501 = pneg %p330
        %s502 = sand.u32 %s320, 1
        %s503 = scalar_lea.sflag [#allocation4], %s502
        %s504 = sand.u32 %s320, 1
        %s505 = smul.addr %s504, 32
        %s506 = scalar_lea.vmem [#allocation8], %s505
        %p507 = pneg %p359
        %p508 = pneg %p356
        %s509 = sand.u32 %s346, 1
        %s510 = scalar_lea.sflag [#allocation10], %s509
        %s511 = sand.u32 %s346, 1
        %s512 = smul.addr %s511, 32
        %s513 = scalar_lea.vmem [#allocation9], %s512
        %p514 = scmp.lt.s32.totalorder %s34, 1
        %s515 = scalar_select %p514, %s34, 1
        %s516 = smul.addr %s515, 4
        %s517 = smul.addr %s516, 8
        %s518 = scalar_lea.vmem %s0, %s517
        %v520 = vld [vmem:[%s518] sm:$0xff]
        %v521 = vld [vmem:[%s518 + $0x8] sm:$0xff]
        %v522 = vld [vmem:[%s518 + $0x10] sm:$0xff]
        %v523 = vld [vmem:[%s518 + $0x18] sm:$0xff]
        %v524 = vpack.c.bf16 %v522, %v520
        %v525 = vpack.c.bf16 %v523, %v521
        %v526 = vld [vmem:[%s1] sm:$0xff]
        %v527 = vld [vmem:[%s1 + $0x8] sm:$0xff]
        %v528 = vpack.c.bf16 %v527, %v526
        %v529 = vld [vmem:[%s2] sm:$0xff]
        %v530 = vld [vmem:[%s2 + $0x8] sm:$0xff]
        %532 = vset.pattern.permute.xlu0 0
        %533 = vperm.xlu0 %532, %v529
        %v534 = vpop.permute.xlu0 %533
        %537 = vset.pattern.permute.xlu0 0
        %538 = vperm.xlu0 %537, %v530
        %v539 = vpop.permute.xlu0 %538
        %vm541 = vcmask 130048
        %v543 = vsel %vm541, %v528, 0
        %545 = vmatprep.subr.bf16.mxu0 %v525
        %546 = vmatpush1.bf16.msra.mxu0 %v524
        %547 = vmatprep.subr.bf16.mxu0 0
        %548 = vmatpush1.bf16.msra.mxu0 0
        %549 = vmatprep.subr.bf16.mxu0 0
        %550 = vmatpush1.bf16.msra.mxu0 0
        %551 = vmatprep.subr.bf16.mxu0 0
        %552 = vmatpush1.bf16.msra.mxu0 0
        %553 = vmatprep.subr.bf16.mxu0 0
        %554 = vmatpush1.bf16.msra.mxu0 0
        %555 = vmatprep.subr.bf16.mxu0 0
        %556 = vmatpush1.bf16.msra.mxu0 0
        %557 = vmatprep.subr.bf16.mxu0 0
        %558 = vmatpush1.bf16.msra.mxu0 0
        %559 = vmatprep.subr.bf16.mxu0 0
        %560 = vmatpush1.bf16.msra.mxu0 0
        %561 = vmatprep.subr.bf16.mxu0 0
        %562 = vmatpush1.bf16.msra.mxu0 0
        %563 = vmatprep.subr.bf16.mxu0 0
        %564 = vmatpush1.bf16.msra.mxu0 0
        %565 = vmatprep.subr.bf16.mxu0 0
        %566 = vmatpush1.bf16.msra.mxu0 0
        %567 = vmatprep.subr.bf16.mxu0 0
        %568 = vmatpush1.bf16.msra.mxu0 0
        %569 = vmatprep.subr.bf16.mxu0 0
        %570 = vmatpush1.bf16.msra.mxu0 0
        %571 = vmatprep.subr.bf16.mxu0 0
        %572 = vmatpush1.bf16.msra.mxu0 0
        %573 = vmatprep.subr.bf16.mxu0 0
        %574 = vmatpush1.bf16.msra.mxu0 0
        %575 = vmatprep.subr.bf16.mxu0 0
        %576 = vmatpush1.bf16.msra.mxu0 0
        %577 = vmatprep.mubr.bf16.mxu0 0
        %578 = vmatmul.mubr.bf16.gmra.mrb[0].mxu0 %v543
        %v579 = vpop.f32.mrb[0].mxu0
        %v580 = vadd.f32 %v534, %v579
        %v581 = vpop.f32.mrb[0].mxu0
        %v582 = vadd.f32 %v534, %v581
        %v583 = vpop.f32.mrb[0].mxu0
        %v584 = vadd.f32 %v539, %v583
        %v585 = vpop.f32.mrb[0].mxu0
        %v586 = vadd.f32 %v539, %v585
        %587 = vdwg.mxu0
        %v588 = vld [vmem:[#allocation2] sm:$0xff]
        %v589 = vpack.c.bf16 %v588, %v588
        %v591 = vsel %vm541, %v589, 0
        %593 = vmatprep.subr.bf16.mxu0 %v525
        %594 = vmatpush1.bf16.msra.mxu0 %v524
        %595 = vmatprep.subr.bf16.mxu0 0
        %596 = vmatpush1.bf16.msra.mxu0 0
        %597 = vmatprep.subr.bf16.mxu0 0
        %598 = vmatpush1.bf16.msra.mxu0 0
        %599 = vmatprep.subr.bf16.mxu0 0
        %600 = vmatpush1.bf16.msra.mxu0 0
        %601 = vmatprep.subr.bf16.mxu0 0
        %602 = vmatpush1.bf16.msra.mxu0 0
        %603 = vmatprep.subr.bf16.mxu0 0
        %604 = vmatpush1.bf16.msra.mxu0 0
        %605 = vmatprep.subr.bf16.mxu0 0
        %606 = vmatpush1.bf16.msra.mxu0 0
        %607 = vmatprep.subr.bf16.mxu0 0
        %608 = vmatpush1.bf16.msra.mxu0 0
        %609 = vmatprep.subr.bf16.mxu0 0
        %610 = vmatpush1.bf16.msra.mxu0 0
        %611 = vmatprep.subr.bf16.mxu0 0
        %612 = vmatpush1.bf16.msra.mxu0 0
        %613 = vmatprep.subr.bf16.mxu0 0
        %614 = vmatpush1.bf16.msra.mxu0 0
        %615 = vmatprep.subr.bf16.mxu0 0
        %616 = vmatpush1.bf16.msra.mxu0 0
        %617 = vmatprep.subr.bf16.mxu0 0
        %618 = vmatpush1.bf16.msra.mxu0 0
        %619 = vmatprep.subr.bf16.mxu0 0
        %620 = vmatpush1.bf16.msra.mxu0 0
        %621 = vmatprep.subr.bf16.mxu0 0
        %622 = vmatpush1.bf16.msra.mxu0 0
        %623 = vmatprep.subr.bf16.mxu0 0
        %624 = vmatpush1.bf16.msra.mxu0 0
        %625 = vmatprep.mubr.bf16.mxu0 0
        %626 = vmatmul.mubr.bf16.gmra.mrb[0].mxu0 %v591
        %v627 = vpop.f32.mrb[0].mxu0
        %v628 = vadd.f32 0.0, %v627
        %v629 = vpop.f32.mrb[0].mxu0
        %v630 = vadd.f32 0.0, %v629
        %v631 = vpop.f32.mrb[0].mxu0
        %v632 = vpop.f32.mrb[0].mxu0
        %633 = vdwg.mxu0
        %v634 = vld [vmem:[%s4] sm:$0xff]
        %636 = vset.pattern.permute.xlu0 0
        %637 = vperm.xlu0 %636, %v634
        %v638 = vpop.permute.xlu0 %637
        %v640 = vmul.f32 %v628, %v638
        %v641 = vmul.f32 %v630, %v638
        %v642 = vld [vmem:[%s5] sm:$0xff]
        %644 = vset.pattern.permute.xlu0 0
        %645 = vperm.xlu0 %644, %v642
        %v646 = vpop.permute.xlu0 %645
        %v648 = vadd.f32 %v640, %v646
        %v649 = vadd.f32 %v641, %v646
        %v650 = vmax.f32 %v648, 0.0
        %v651 = vmax.f32 %v649, 0.0
        %v652 = vld [vmem:[#allocation5] sm:$0xff]
        %v653 = vld [vmem:[#allocation5 + $0x8] sm:$0xff]
        %v654 = vld [vmem:[#allocation5 + $0x10] sm:$0xff]
        %v655 = vld [vmem:[#allocation5 + $0x18] sm:$0xff]
        %v656 = vld [vmem:[#allocation5 + $0x20] sm:$0xff]
        %v657 = vld [vmem:[#allocation5 + $0x28] sm:$0xff]
        %v658 = vld [vmem:[#allocation5 + $0x30] sm:$0xff]
        %v659 = vld [vmem:[#allocation5 + $0x38] sm:$0xff]
        %v660 = vld [vmem:[#allocation5 + $0x40] sm:$0xff]
        %v661 = vld [vmem:[#allocation5 + $0x48] sm:$0xff]
        %v662 = vld [vmem:[#allocation5 + $0x50] sm:$0xff]
        %v663 = vld [vmem:[#allocation5 + $0x58] sm:$0xff]
        %v664 = vld [vmem:[#allocation5 + $0x60] sm:$0xff]
        %v665 = vld [vmem:[#allocation5 + $0x68] sm:$0xff]
        %v666 = vld [vmem:[#allocation5 + $0x70] sm:$0xff]
        %v667 = vld [vmem:[#allocation5 + $0x78] sm:$0xff]
        %v668 = vld [vmem:[#allocation5 + $0x80] sm:$0xff]
        %v669 = vld [vmem:[#allocation5 + $0x88] sm:$0xff]
        %v670 = vld [vmem:[#allocation5 + $0x90] sm:$0xff]
        %v671 = vld [vmem:[#allocation5 + $0x98] sm:$0xff]
        %v672 = vld [vmem:[#allocation5 + $0xa0] sm:$0xff]
        %v673 = vld [vmem:[#allocation5 + $0xa8] sm:$0xff]
        %v674 = vld [vmem:[#allocation5 + $0xb0] sm:$0xff]
        %v675 = vld [vmem:[#allocation5 + $0xb8] sm:$0xff]
        %v676 = vld [vmem:[#allocation5 + $0xc0] sm:$0xff]
        %v677 = vld [vmem:[#allocation5 + $0xc8] sm:$0xff]
        %v678 = vld [vmem:[#allocation5 + $0xd0] sm:$0xff]
        %v679 = vld [vmem:[#allocation5 + $0xd8] sm:$0xff]
        %v680 = vld [vmem:[#allocation5 + $0xe0] sm:$0xff]
        %v681 = vld [vmem:[#allocation5 + $0xe8] sm:$0xff]
        %v682 = vld [vmem:[#allocation5 + $0xf0] sm:$0xff]
        %v683 = vld [vmem:[#allocation5 + $0xf8] sm:$0xff]
        %v684 = vpack.c.bf16 %v654, %v652
        %v685 = vpack.c.bf16 %v655, %v653
        %v686 = vpack.c.bf16 %v658, %v656
        %v687 = vpack.c.bf16 %v659, %v657
        %v688 = vpack.c.bf16 %v662, %v660
        %v689 = vpack.c.bf16 %v663, %v661
        %v690 = vpack.c.bf16 %v666, %v664
        %v691 = vpack.c.bf16 %v667, %v665
        %v692 = vpack.c.bf16 %v670, %v668
        %v693 = vpack.c.bf16 %v671, %v669
        %v694 = vpack.c.bf16 %v674, %v672
        %v695 = vpack.c.bf16 %v675, %v673
        %v696 = vpack.c.bf16 %v678, %v676
        %v697 = vpack.c.bf16 %v679, %v677
        %v698 = vpack.c.bf16 %v682, %v680
        %v699 = vpack.c.bf16 %v683, %v681
        %v700 = vpack.c.bf16 %v584, %v580
        %v701 = vpack.c.bf16 %v586, %v582
        %702 = vmatprep.subr.bf16.mxu0 %v685
        %703 = vmatpush1.bf16.xpose.msra.mxu0 %v684
        %704 = vmatprep.subr.bf16.mxu0 %v687
        %705 = vmatpush1.bf16.xpose.msra.mxu0 %v686
        %706 = vmatprep.subr.bf16.mxu0 %v689
        %707 = vmatpush1.bf16.xpose.msra.mxu0 %v688
        %708 = vmatprep.subr.bf16.mxu0 %v691
        %709 = vmatpush1.bf16.xpose.msra.mxu0 %v690
        %710 = vmatprep.subr.bf16.mxu0 %v693
        %711 = vmatpush1.bf16.xpose.msra.mxu0 %v692
        %712 = vmatprep.subr.bf16.mxu0 %v695
        %713 = vmatpush1.bf16.xpose.msra.mxu0 %v694
        %714 = vmatprep.subr.bf16.mxu0 %v697
        %715 = vmatpush1.bf16.xpose.msra.mxu0 %v696
        %716 = vmatprep.subr.bf16.mxu0 %v699
        %717 = vmatpush1.bf16.xpose.msra.mxu0 %v698
        %718 = vmatprep.subr.bf16.mxu0 0
        %719 = vmatpush1.bf16.xpose.msra.mxu0 0
        %720 = vmatprep.subr.bf16.mxu0 0
        %721 = vmatpush1.bf16.xpose.msra.mxu0 0
        %722 = vmatprep.subr.bf16.mxu0 0
        %723 = vmatpush1.bf16.xpose.msra.mxu0 0
        %724 = vmatprep.subr.bf16.mxu0 0
        %725 = vmatpush1.bf16.xpose.msra.mxu0 0
        %726 = vmatprep.subr.bf16.mxu0 0
        %727 = vmatpush1.bf16.xpose.msra.mxu0 0
        %728 = vmatprep.subr.bf16.mxu0 0
        %729 = vmatpush1.bf16.xpose.msra.mxu0 0
        %730 = vmatprep.subr.bf16.mxu0 0
        %731 = vmatpush1.bf16.xpose.msra.mxu0 0
        %732 = vmatprep.subr.bf16.mxu0 0
        %733 = vmatpush1.bf16.xpose.msra.mxu0 0
        %734 = vmatprep.mubr.bf16.mxu0 %v701
        %735 = vmatmul.mubr.bf16.gmra.mrb[0].mxu0 %v700
        %v736 = vpop.f32.mrb[0].mxu0
        %v737 = vadd.f32 0.0, %v736
        %v738 = vpop.f32.mrb[0].mxu0
        %v739 = vpop.f32.mrb[0].mxu0
        %v740 = vadd.f32 0.0, %v739
        %v741 = vpop.f32.mrb[0].mxu0
        %742 = vdwg.mxu0
        %v743 = vpack.c.bf16 %v650, %v650
        %v744 = vpack.c.bf16 %v651, %v651
        %745 = vmatprep.subr.bf16.mxu0 %v744
        %746 = vmatpush1.bf16.xpose.msra.mxu0 %v743
        %747 = vmatprep.subr.bf16.mxu0 0
        %748 = vmatpush1.bf16.xpose.msra.mxu0 0
        %749 = vmatprep.subr.bf16.mxu0 0
        %750 = vmatpush1.bf16.xpose.msra.mxu0 0
        %751 = vmatprep.subr.bf16.mxu0 0
        %752 = vmatpush1.bf16.xpose.msra.mxu0 0
        %753 = vmatprep.subr.bf16.mxu0 0
        %754 = vmatpush1.bf16.xpose.msra.mxu0 0
        %755 = vmatprep.subr.bf16.mxu0 0
        %756 = vmatpush1.bf16.xpose.msra.mxu0 0
        %757 = vmatprep.subr.bf16.mxu0 0
        %758 = vmatpush1.bf16.xpose.msra.mxu0 0
        %759 = vmatprep.subr.bf16.mxu0 0
        %760 = vmatpush1.bf16.xpose.msra.mxu0 0
        %761 = vmatprep.subr.bf16.mxu0 0
        %762 = vmatpush1.bf16.xpose.msra.mxu0 0
        %763 = vmatprep.subr.bf16.mxu0 0
        %764 = vmatpush1.bf16.xpose.msra.mxu0 0
        %765 = vmatprep.subr.bf16.mxu0 0
        %766 = vmatpush1.bf16.xpose.msra.mxu0 0
        %767 = vmatprep.subr.bf16.mxu0 0
        %768 = vmatpush1.bf16.xpose.msra.mxu0 0
        %769 = vmatprep.subr.bf16.mxu0 0
        %770 = vmatpush1.bf16.xpose.msra.mxu0 0
        %771 = vmatprep.subr.bf16.mxu0 0
        %772 = vmatpush1.bf16.xpose.msra.mxu0 0
        %773 = vmatprep.subr.bf16.mxu0 0
        %774 = vmatpush1.bf16.xpose.msra.mxu0 0
        %775 = vmatprep.subr.bf16.mxu0 0
        %776 = vmatpush1.bf16.xpose.msra.mxu0 0
        %777 = vmatprep.mubr.bf16.mxu0 %v685
        %778 = vmatmul.mubr.bf16.gmra.mrb[0].mxu0 %v684
        %v779 = vpop.f32.mrb[0].mxu0
        %v780 = vadd.f32 0.0, %v779
        %v781 = vpop.f32.mrb[0].mxu0
        %v782 = vpop.f32.mrb[0].mxu0
        %v783 = vadd.f32 0.0, %v782
        %v784 = vpop.f32.mrb[0].mxu0
        %785 = vmatprep.mubr.bf16.mxu0 %v687
        %786 = vmatmul.mubr.bf16.gmra.mrb[0].mxu0 %v686
        %v787 = vpop.f32.mrb[0].mxu0
        %v788 = vadd.f32 0.0, %v787
        %v789 = vpop.f32.mrb[0].mxu0
        %v790 = vpop.f32.mrb[0].mxu0
        %v791 = vadd.f32 0.0, %v790
        %v792 = vpop.f32.mrb[0].mxu0
        %793 = vmatprep.mubr.bf16.mxu0 %v689
        %794 = vmatmul.mubr.bf16.gmra.mrb[0].mxu0 %v688
        %v795 = vpop.f32.mrb[0].mxu0
        %v796 = vadd.f32 0.0, %v795
        %v797 = vpop.f32.mrb[0].mxu0
        %v798 = vpop.f32.mrb[0].mxu0
        %v799 = vadd.f32 0.0, %v798
        %v800 = vpop.f32.mrb[0].mxu0
        %801 = vmatprep.mubr.bf16.mxu0 %v691
        %802 = vmatmul.mubr.bf16.gmra.mrb[0].mxu0 %v690
        %v803 = vpop.f32.mrb[0].mxu0
        %v804 = vadd.f32 0.0, %v803
        %v805 = vpop.f32.mrb[0].mxu0
        %v806 = vpop.f32.mrb[0].mxu0
        %v807 = vadd.f32 0.0, %v806
        %v808 = vpop.f32.mrb[0].mxu0
        %809 = vmatprep.mubr.bf16.mxu0 %v693
        %810 = vmatmul.mubr.bf16.gmra.mrb[0].mxu0 %v692
        %v811 = vpop.f32.mrb[0].mxu0
        %v812 = vadd.f32 0.0, %v811
        %v813 = vpop.f32.mrb[0].mxu0
        %v814 = vpop.f32.mrb[0].mxu0
        %v815 = vadd.f32 0.0, %v814
        %v816 = vpop.f32.mrb[0].mxu0
        %817 = vmatprep.mubr.bf16.mxu0 %v695
        %818 = vmatmul.mubr.bf16.gmra.mrb[0].mxu0 %v694
        %v819 = vpop.f32.mrb[0].mxu0
        %v820 = vadd.f32 0.0, %v819
        %v821 = vpop.f32.mrb[0].mxu0
        %v822 = vpop.f32.mrb[0].mxu0
        %v823 = vadd.f32 0.0, %v822
        %v824 = vpop.f32.mrb[0].mxu0
        %825 = vmatprep.mubr.bf16.mxu0 %v697
        %826 = vmatmul.mubr.bf16.gmra.mrb[0].mxu0 %v696
        %v827 = vpop.f32.mrb[0].mxu0
        %v828 = vadd.f32 0.0, %v827
        %v829 = vpop.f32.mrb[0].mxu0
        %v830 = vpop.f32.mrb[0].mxu0
        %v831 = vadd.f32 0.0, %v830
        %v832 = vpop.f32.mrb[0].mxu0
        %833 = vmatprep.mubr.bf16.mxu0 %v699
        %834 = vmatmul.mubr.bf16.gmra.mrb[0].mxu0 %v698
        %v835 = vpop.f32.mrb[0].mxu0
        %v836 = vadd.f32 0.0, %v835
        %v837 = vpop.f32.mrb[0].mxu0
        %v838 = vpop.f32.mrb[0].mxu0
        %v839 = vadd.f32 0.0, %v838
        %v840 = vpop.f32.mrb[0].mxu0
        %841 = vdwg.mxu0
        %vm842 = vcmask 64512
        %v844 = vsel %vm842, %v780, 0
        %v847 = vsel %vm842, %v783, 0
        %v850 = vsel %vm842, %v788, 0
        %v853 = vsel %vm842, %v791, 0
        %v856 = vsel %vm842, %v796, 0
        %v859 = vsel %vm842, %v799, 0
        %v862 = vsel %vm842, %v804, 0
        %v865 = vsel %vm842, %v807, 0
        %v868 = vsel %vm842, %v812, 0
        %v871 = vsel %vm842, %v815, 0
        %v874 = vsel %vm842, %v820, 0
        %v877 = vsel %vm842, %v823, 0
        %v880 = vsel %vm842, %v828, 0
        %v883 = vsel %vm842, %v831, 0
        %v886 = vsel %vm842, %v836, 0
        %v889 = vsel %vm842, %v839, 0
        %891 = vmatprep.subr.mxu0 %v651
        %892 = vmatpush1.msra.mxu0 %v650
        %893 = vmatprep.subr.mxu0 0.0
        %894 = vmatpush1.msra.mxu0 0.0
        %895 = vmatprep.subr.mxu0 0.0
        %896 = vmatpush1.msra.mxu0 0.0
        %897 = vmatprep.subr.mxu0 0.0
        %898 = vmatpush1.msra.mxu0 0.0
        %899 = vmatprep.subr.mxu0 0.0
        %900 = vmatpush1.msra.mxu0 0.0
        %901 = vmatprep.subr.mxu0 0.0
        %902 = vmatpush1.msra.mxu0 0.0
        %903 = vmatprep.subr.mxu0 0.0
        %904 = vmatpush1.msra.mxu0 0.0
        %905 = vmatprep.subr.mxu0 0.0
        %906 = vmatpush1.msra.mxu0 0.0
        %907 = vmatprep.subr.mxu0 0.0
        %908 = vmatpush1.msra.mxu0 0.0
        %909 = vmatprep.subr.mxu0 0.0
        %910 = vmatpush1.msra.mxu0 0.0
        %911 = vmatprep.subr.mxu0 0.0
        %912 = vmatpush1.msra.mxu0 0.0
        %913 = vmatprep.subr.mxu0 0.0
        %914 = vmatpush1.msra.mxu0 0.0
        %915 = vmatprep.subr.mxu0 0.0
        %916 = vmatpush1.msra.mxu0 0.0
        %917 = vmatprep.subr.mxu0 0.0
        %918 = vmatpush1.msra.mxu0 0.0
        %919 = vmatprep.subr.mxu0 0.0
        %920 = vmatpush1.msra.mxu0 0.0
        %921 = vmatprep.subr.mxu0 0.0
        %922 = vmatpush1.msra.mxu0 0.0
        %923 = vmatprep.subr.mxu0 0.0
        %924 = vmatpush1.msra.mxu0 0.0
        %925 = vmatprep.subr.mxu0 0.0
        %926 = vmatpush1.msra.mxu0 0.0
        %927 = vmatprep.subr.mxu0 0.0
        %928 = vmatpush1.msra.mxu0 0.0
        %929 = vmatprep.subr.mxu0 0.0
        %930 = vmatpush1.msra.mxu0 0.0
        %931 = vmatprep.subr.mxu0 0.0
        %932 = vmatpush1.msra.mxu0 0.0
        %933 = vmatprep.subr.mxu0 0.0
        %934 = vmatpush1.msra.mxu0 0.0
        %935 = vmatprep.subr.mxu0 0.0
        %936 = vmatpush1.msra.mxu0 0.0
        %937 = vmatprep.subr.mxu0 0.0
        %938 = vmatpush1.msra.mxu0 0.0
        %939 = vmatprep.subr.mxu0 0.0
        %940 = vmatpush1.msra.mxu0 0.0
        %941 = vmatprep.subr.mxu0 0.0
        %942 = vmatpush1.msra.mxu0 0.0
        %943 = vmatprep.subr.mxu0 0.0
        %944 = vmatpush1.msra.mxu0 0.0
        %945 = vmatprep.subr.mxu0 0.0
        %946 = vmatpush1.msra.mxu0 0.0
        %947 = vmatprep.subr.mxu0 0.0
        %948 = vmatpush1.msra.mxu0 0.0
        %949 = vmatprep.subr.mxu0 0.0
        %950 = vmatpush1.msra.mxu0 0.0
        %951 = vmatprep.subr.mxu0 0.0
        %952 = vmatpush1.msra.mxu0 0.0
        %953 = vmatprep.subr.mxu0 0.0
        %954 = vmatpush1.msra.mxu0 0.0
        %955 = vmatprep.mubr.f32.mxu0 0.0
        %956 = vmatmul.mubr.f32.gmra.mrb[0].mxu0 %v844
        %v957 = vpop.f32.mrb[0].mxu0
        %v958 = vadd.f32 0.0, %v957
        %v959 = vpop.f32.mrb[0].mxu0
        %v960 = vadd.f32 0.0, %v959
        %961 = vmatprep.mubr.f32.mxu0 0.0
        %962 = vmatmul.mubr.f32.gmra.mrb[0].mxu0 %v847
        %v963 = vpop.f32.mrb[0].mxu0
        %v964 = vadd.f32 0.0, %v963
        %v965 = vpop.f32.mrb[0].mxu0
        %v966 = vadd.f32 0.0, %v965
        %967 = vmatprep.mubr.f32.mxu0 0.0
        %968 = vmatmul.mubr.f32.gmra.mrb[0].mxu0 %v850
        %v969 = vpop.f32.mrb[0].mxu0
        %v970 = vadd.f32 0.0, %v969
        %v971 = vpop.f32.mrb[0].mxu0
        %v972 = vadd.f32 0.0, %v971
        %973 = vmatprep.mubr.f32.mxu0 0.0
        %974 = vmatmul.mubr.f32.gmra.mrb[0].mxu0 %v853
        %v975 = vpop.f32.mrb[0].mxu0
        %v976 = vadd.f32 0.0, %v975
        %v977 = vpop.f32.mrb[0].mxu0
        %v978 = vadd.f32 0.0, %v977
        %979 = vmatprep.mubr.f32.mxu0 0.0
        %980 = vmatmul.mubr.f32.gmra.mrb[0].mxu0 %v856
        %v981 = vpop.f32.mrb[0].mxu0
        %v982 = vadd.f32 0.0, %v981
        %v983 = vpop.f32.mrb[0].mxu0
        %v984 = vadd.f32 0.0, %v983
        %985 = vmatprep.mubr.f32.mxu0 0.0
        %986 = vmatmul.mubr.f32.gmra.mrb[0].mxu0 %v859
        %v987 = vpop.f32.mrb[0].mxu0
        %v988 = vadd.f32 0.0, %v987
        %v989 = vpop.f32.mrb[0].mxu0
        %v990 = vadd.f32 0.0, %v989
        %991 = vmatprep.mubr.f32.mxu0 0.0
        %992 = vmatmul.mubr.f32.gmra.mrb[0].mxu0 %v862
        %v993 = vpop.f32.mrb[0].mxu0
        %v994 = vadd.f32 0.0, %v993
        %v995 = vpop.f32.mrb[0].mxu0
        %v996 = vadd.f32 0.0, %v995
        %997 = vmatprep.mubr.f32.mxu0 0.0
        %998 = vmatmul.mubr.f32.gmra.mrb[0].mxu0 %v865
        %v999 = vpop.f32.mrb[0].mxu0
        %v1000 = vadd.f32 0.0, %v999
        %v1001 = vpop.f32.mrb[0].mxu0
        %v1002 = vadd.f32 0.0, %v1001
        %1003 = vmatprep.mubr.f32.mxu0 0.0
        %1004 = vmatmul.mubr.f32.gmra.mrb[0].mxu0 %v868
        %v1005 = vpop.f32.mrb[0].mxu0
        %v1006 = vadd.f32 0.0, %v1005
        %v1007 = vpop.f32.mrb[0].mxu0
        %v1008 = vadd.f32 0.0, %v1007
        %1009 = vmatprep.mubr.f32.mxu0 0.0
        %1010 = vmatmul.mubr.f32.gmra.mrb[0].mxu0 %v871
        %v1011 = vpop.f32.mrb[0].mxu0
        %v1012 = vadd.f32 0.0, %v1011
        %v1013 = vpop.f32.mrb[0].mxu0
        %v1014 = vadd.f32 0.0, %v1013
        %1015 = vmatprep.mubr.f32.mxu0 0.0
        %1016 = vmatmul.mubr.f32.gmra.mrb[0].mxu0 %v874
        %v1017 = vpop.f32.mrb[0].mxu0
        %v1018 = vadd.f32 0.0, %v1017
        %v1019 = vpop.f32.mrb[0].mxu0
        %v1020 = vadd.f32 0.0, %v1019
        %1021 = vmatprep.mubr.f32.mxu0 0.0
        %1022 = vmatmul.mubr.f32.gmra.mrb[0].mxu0 %v877
        %v1023 = vpop.f32.mrb[0].mxu0
        %v1024 = vadd.f32 0.0, %v1023
        %v1025 = vpop.f32.mrb[0].mxu0
        %v1026 = vadd.f32 0.0, %v1025
        %1027 = vmatprep.mubr.f32.mxu0 0.0
        %1028 = vmatmul.mubr.f32.gmra.mrb[0].mxu0 %v880
        %v1029 = vpop.f32.mrb[0].mxu0
        %v1030 = vadd.f32 0.0, %v1029
        %v1031 = vpop.f32.mrb[0].mxu0
        %v1032 = vadd.f32 0.0, %v1031
        %1033 = vmatprep.mubr.f32.mxu0 0.0
        %1034 = vmatmul.mubr.f32.gmra.mrb[0].mxu0 %v883
        %v1035 = vpop.f32.mrb[0].mxu0
        %v1036 = vadd.f32 0.0, %v1035
        %v1037 = vpop.f32.mrb[0].mxu0
        %v1038 = vadd.f32 0.0, %v1037
        %1039 = vmatprep.mubr.f32.mxu0 0.0
        %1040 = vmatmul.mubr.f32.gmra.mrb[0].mxu0 %v886
        %v1041 = vpop.f32.mrb[0].mxu0
        %v1042 = vadd.f32 0.0, %v1041
        %v1043 = vpop.f32.mrb[0].mxu0
        %v1044 = vadd.f32 0.0, %v1043
        %1045 = vmatprep.mubr.f32.mxu0 0.0
        %1046 = vmatmul.mubr.f32.gmra.mrb[0].mxu0 %v889
        %v1047 = vpop.f32.mrb[0].mxu0
        %v1048 = vadd.f32 0.0, %v1047
        %v1049 = vpop.f32.mrb[0].mxu0
        %v1050 = vadd.f32 0.0, %v1049
        %1051 = vdwg.mxu0
        %v1052 = vmul.f32 %v958, 0.35355338
        %v1053 = vmul.f32 %v960, 0.35355338
        %v1054 = vmul.f32 %v964, 0.35355338
        %v1055 = vmul.f32 %v966, 0.35355338
        %v1056 = vmul.f32 %v970, 0.35355338
        %v1057 = vmul.f32 %v972, 0.35355338
        %v1058 = vmul.f32 %v976, 0.35355338
        %v1059 = vmul.f32 %v978, 0.35355338
        %v1060 = vmul.f32 %v982, 0.35355338
        %v1061 = vmul.f32 %v984, 0.35355338
        %v1062 = vmul.f32 %v988, 0.35355338
        %v1063 = vmul.f32 %v990, 0.35355338
        %v1064 = vmul.f32 %v994, 0.35355338
        %v1065 = vmul.f32 %v996, 0.35355338
        %v1066 = vmul.f32 %v1000, 0.35355338
        %v1067 = vmul.f32 %v1002, 0.35355338
        %v1068 = vmul.f32 %v1006, 0.35355338
        %v1069 = vmul.f32 %v1008, 0.35355338
        %v1070 = vmul.f32 %v1012, 0.35355338
        %v1071 = vmul.f32 %v1014, 0.35355338
        %v1072 = vmul.f32 %v1018, 0.35355338
        %v1073 = vmul.f32 %v1020, 0.35355338
        %v1074 = vmul.f32 %v1024, 0.35355338
        %v1075 = vmul.f32 %v1026, 0.35355338
        %v1076 = vmul.f32 %v1030, 0.35355338
        %v1077 = vmul.f32 %v1032, 0.35355338
        %v1078 = vmul.f32 %v1036, 0.35355338
        %v1079 = vmul.f32 %v1038, 0.35355338
        %v1080 = vmul.f32 %v1042, 0.35355338
        %v1081 = vmul.f32 %v1044, 0.35355338
        %v1082 = vmul.f32 %v1048, 0.35355338
        %v1083 = vmul.f32 %v1050, 0.35355338
        %v1084 = vlaneseq
        %v1085 = vshrl.u32 %v1084, 7
        %v1086 = vadd.s32 %v1085, 8
        %v1087 = vadd.s32 %v1085, 16
        %v1088 = vadd.s32 %v1085, 24
        %v1089 = vadd.s32 %v1085, 32
        %v1090 = vadd.s32 %v1085, 40
        %v1091 = vadd.s32 %v1085, 48
        %v1092 = vadd.s32 %v1085, 56
        %v1093 = vadd.s32 %v1085, 64
        %v1094 = vadd.s32 %v1085, 72
        %v1095 = vadd.s32 %v1085, 80
        %v1096 = vadd.s32 %v1085, 88
        %v1097 = vadd.s32 %v1085, 96
        %v1098 = vadd.s32 %v1085, 104
        %v1099 = vadd.s32 %v1085, 112
        %v1100 = vadd.s32 %v1085, 120
        %vm1101 = vcmp.lt.s32.totalorder %v1085, 110
        %vm1102 = vcmp.lt.s32.totalorder %v1086, 110
        %vm1103 = vcmp.lt.s32.totalorder %v1087, 110
        %vm1104 = vcmp.lt.s32.totalorder %v1088, 110
        %vm1105 = vcmp.lt.s32.totalorder %v1089, 110
        %vm1106 = vcmp.lt.s32.totalorder %v1090, 110
        %vm1107 = vcmp.lt.s32.totalorder %v1091, 110
        %vm1108 = vcmp.lt.s32.totalorder %v1092, 110
        %vm1109 = vcmp.lt.s32.totalorder %v1093, 110
        %vm1110 = vcmp.lt.s32.totalorder %v1094, 110
        %vm1111 = vcmp.lt.s32.totalorder %v1095, 110
        %vm1112 = vcmp.lt.s32.totalorder %v1096, 110
        %vm1113 = vcmp.lt.s32.totalorder %v1097, 110
        %vm1114 = vcmp.lt.s32.totalorder %v1098, 110
        %vm1115 = vcmp.lt.s32.totalorder %v1099, 110
        %vm1116 = vcmp.lt.s32.totalorder %v1100, 110
        %v1117 = vsel %vm1101, %v1052, -1e+30
        %v1118 = vsel %vm1101, %v1053, -1e+30
        %v1119 = vsel %vm1102, %v1054, -1e+30
        %v1120 = vsel %vm1102, %v1055, -1e+30
        %v1121 = vsel %vm1103, %v1056, -1e+30
        %v1122 = vsel %vm1103, %v1057, -1e+30
        %v1123 = vsel %vm1104, %v1058, -1e+30
        %v1124 = vsel %vm1104, %v1059, -1e+30
        %v1125 = vsel %vm1105, %v1060, -1e+30
        %v1126 = vsel %vm1105, %v1061, -1e+30
        %v1127 = vsel %vm1106, %v1062, -1e+30
        %v1128 = vsel %vm1106, %v1063, -1e+30
        %v1129 = vsel %vm1107, %v1064, -1e+30
        %v1130 = vsel %vm1107, %v1065, -1e+30
        %v1131 = vsel %vm1108, %v1066, -1e+30
        %v1132 = vsel %vm1108, %v1067, -1e+30
        %v1133 = vsel %vm1109, %v1068, -1e+30
        %v1134 = vsel %vm1109, %v1069, -1e+30
        %v1135 = vsel %vm1110, %v1070, -1e+30
        %v1136 = vsel %vm1110, %v1071, -1e+30
        %v1137 = vsel %vm1111, %v1072, -1e+30
        %v1138 = vsel %vm1111, %v1073, -1e+30
        %v1139 = vsel %vm1112, %v1074, -1e+30
        %v1140 = vsel %vm1112, %v1075, -1e+30
        %v1141 = vsel %vm1113, %v1076, -1e+30
        %v1142 = vsel %vm1113, %v1077, -1e+30
        %v1143 = vsel %vm1114, %v1078, -1e+30
        %v1144 = vsel %vm1114, %v1079, -1e+30
        %v1145 = vsel %vm1115, %v1080, -1e+30
        %v1146 = vsel %vm1115, %v1081, -1e+30
        %v1147 = vsel %vm1116, %v1082, -1e+30
        %v1148 = vsel %vm1116, %v1083, -1e+30
        %v1149 = vmax.f32 %v1117, %v1121
        %v1150 = vmax.f32 %v1119, %v1123
        %v1151 = vmax.f32 %v1149, %v1125
        %v1152 = vmax.f32 %v1150, %v1127
        %v1153 = vmax.f32 %v1151, %v1129
        %v1154 = vmax.f32 %v1152, %v1131
        %v1155 = vmax.f32 %v1153, %v1133
        %v1156 = vmax.f32 %v1154, %v1135
        %v1157 = vmax.f32 %v1155, %v1137
        %v1158 = vmax.f32 %v1156, %v1139
        %v1159 = vmax.f32 %v1157, %v1141
        %v1160 = vmax.f32 %v1158, %v1143
        %v1161 = vmax.f32 %v1159, %v1145
        %v1162 = vmax.f32 %v1160, %v1147
        %v1163 = vmax.f32 %v1161, %v1162
        %v1164 = vrot.slane %v1163, 4
        %v1165 = vmax.f32 %v1163, %v1164
        %v1166 = vrot.slane %v1165, 2
        %v1167 = vmax.f32 %v1165, %v1166
        %v1168 = vrot.slane %v1167, 1
        %v1169 = vmax.f32 %v1167, %v1168
        %v1170 = vmax.f32 %v1118, %v1122
        %v1171 = vmax.f32 %v1120, %v1124
        %v1172 = vmax.f32 %v1170, %v1126
        %v1173 = vmax.f32 %v1171, %v1128
        %v1174 = vmax.f32 %v1172, %v1130
        %v1175 = vmax.f32 %v1173, %v1132
        %v1176 = vmax.f32 %v1174, %v1134
        %v1177 = vmax.f32 %v1175, %v1136
        %v1178 = vmax.f32 %v1176, %v1138
        %v1179 = vmax.f32 %v1177, %v1140
        %v1180 = vmax.f32 %v1178, %v1142
        %v1181 = vmax.f32 %v1179, %v1144
        %v1182 = vmax.f32 %v1180, %v1146
        %v1183 = vmax.f32 %v1181, %v1148
        %v1184 = vmax.f32 %v1182, %v1183
        %v1185 = vrot.slane %v1184, 4
        %v1186 = vmax.f32 %v1184, %v1185
        %v1187 = vrot.slane %v1186, 2
        %v1188 = vmax.f32 %v1186, %v1187
        %v1189 = vrot.slane %v1188, 1
        %v1190 = vmax.f32 %v1188, %v1189
        %v1191 = vsub.f32 %v1117, %v1169
        %v1192 = vsub.f32 %v1118, %v1190
        %v1193 = vsub.f32 %v1119, %v1169
        %v1194 = vsub.f32 %v1120, %v1190
        %v1195 = vsub.f32 %v1121, %v1169
        %v1196 = vsub.f32 %v1122, %v1190
        %v1197 = vsub.f32 %v1123, %v1169
        %v1198 = vsub.f32 %v1124, %v1190
        %v1199 = vsub.f32 %v1125, %v1169
        %v1200 = vsub.f32 %v1126, %v1190
        %v1201 = vsub.f32 %v1127, %v1169
        %v1202 = vsub.f32 %v1128, %v1190
        %v1203 = vsub.f32 %v1129, %v1169
        %v1204 = vsub.f32 %v1130, %v1190
        %v1205 = vsub.f32 %v1131, %v1169
        %v1206 = vsub.f32 %v1132, %v1190
        %v1207 = vsub.f32 %v1133, %v1169
        %v1208 = vsub.f32 %v1134, %v1190
        %v1209 = vsub.f32 %v1135, %v1169
        %v1210 = vsub.f32 %v1136, %v1190
        %v1211 = vsub.f32 %v1137, %v1169
        %v1212 = vsub.f32 %v1138, %v1190
        %v1213 = vsub.f32 %v1139, %v1169
        %v1214 = vsub.f32 %v1140, %v1190
        %v1215 = vsub.f32 %v1141, %v1169
        %v1216 = vsub.f32 %v1142, %v1190
        %v1217 = vsub.f32 %v1143, %v1169
        %v1218 = vsub.f32 %v1144, %v1190
        %v1219 = vsub.f32 %v1145, %v1169
        %v1220 = vsub.f32 %v1146, %v1190
        %v1221 = vsub.f32 %v1147, %v1169
        %v1222 = vsub.f32 %v1148, %v1190
        %v1223 = vmul.f32 %v1191, 1.442695
        %v1224 = vpow.pop %v1223
        %v1225 = vmul.f32 %v1192, 1.442695
        %v1226 = vpow.pop %v1225
        %v1227 = vmul.f32 %v1193, 1.442695
        %v1228 = vpow.pop %v1227
        %v1229 = vmul.f32 %v1194, 1.442695
        %v1230 = vpow.pop %v1229
        %v1231 = vmul.f32 %v1195, 1.442695
        %v1232 = vpow.pop %v1231
        %v1233 = vmul.f32 %v1196, 1.442695
        %v1234 = vpow.pop %v1233
        %v1235 = vmul.f32 %v1197, 1.442695
        %v1236 = vpow.pop %v1235
        %v1237 = vmul.f32 %v1198, 1.442695
        %v1238 = vpow.pop %v1237
        %v1239 = vmul.f32 %v1199, 1.442695
        %v1240 = vpow.pop %v1239
        %v1241 = vmul.f32 %v1200, 1.442695
        %v1242 = vpow.pop %v1241
        %v1243 = vmul.f32 %v1201, 1.442695
        %v1244 = vpow.pop %v1243
        %v1245 = vmul.f32 %v1202, 1.442695
        %v1246 = vpow.pop %v1245
        %v1247 = vmul.f32 %v1203, 1.442695
        %v1248 = vpow.pop %v1247
        %v1249 = vmul.f32 %v1204, 1.442695
        %v1250 = vpow.pop %v1249
        %v1251 = vmul.f32 %v1205, 1.442695
        %v1252 = vpow.pop %v1251
        %v1253 = vmul.f32 %v1206, 1.442695
        %v1254 = vpow.pop %v1253
        %v1255 = vmul.f32 %v1207, 1.442695
        %v1256 = vpow.pop %v1255
        %v1257 = vmul.f32 %v1208, 1.442695
        %v1258 = vpow.pop %v1257
        %v1259 = vmul.f32 %v1209, 1.442695
        %v1260 = vpow.pop %v1259
        %v1261 = vmul.f32 %v1210, 1.442695
        %v1262 = vpow.pop %v1261
        %v1263 = vmul.f32 %v1211, 1.442695
        %v1264 = vpow.pop %v1263
        %v1265 = vmul.f32 %v1212, 1.442695
        %v1266 = vpow.pop %v1265
        %v1267 = vmul.f32 %v1213, 1.442695
        %v1268 = vpow.pop %v1267
        %v1269 = vmul.f32 %v1214, 1.442695
        %v1270 = vpow.pop %v1269
        %v1271 = vmul.f32 %v1215, 1.442695
        %v1272 = vpow.pop %v1271
        %v1273 = vmul.f32 %v1216, 1.442695
        %v1274 = vpow.pop %v1273
        %v1275 = vmul.f32 %v1217, 1.442695
        %v1276 = vpow.pop %v1275
        %v1277 = vmul.f32 %v1218, 1.442695
        %v1278 = vpow.pop %v1277
        %v1279 = vmul.f32 %v1219, 1.442695
        %v1280 = vpow.pop %v1279
        %v1281 = vmul.f32 %v1220, 1.442695
        %v1282 = vpow.pop %v1281
        %v1283 = vmul.f32 %v1221, 1.442695
        %v1284 = vpow.pop %v1283
        %v1285 = vmul.f32 %v1222, 1.442695
        %v1286 = vpow.pop %v1285
        %v1287 = vadd.f32 %v1224, %v1228
        %v1288 = vadd.f32 %v1287, %v1232
        %v1289 = vadd.f32 %v1288, %v1236
        %v1290 = vadd.f32 %v1289, %v1240
        %v1291 = vadd.f32 %v1290, %v1244
        %v1292 = vadd.f32 %v1291, %v1248
        %v1293 = vadd.f32 %v1292, %v1252
        %v1294 = vadd.f32 %v1293, %v1256
        %v1295 = vadd.f32 %v1294, %v1260
        %v1296 = vadd.f32 %v1295, %v1264
        %v1297 = vadd.f32 %v1296, %v1268
        %v1298 = vadd.f32 %v1297, %v1272
        %v1299 = vadd.f32 %v1298, %v1276
        %v1300 = vadd.f32 %v1299, %v1280
        %v1301 = vadd.f32 %v1300, %v1284
        %v1302 = vrot.slane %v1301, 4
        %v1303 = vadd.f32 %v1301, %v1302
        %v1304 = vrot.slane %v1303, 2
        %v1305 = vadd.f32 %v1303, %v1304
        %v1306 = vrot.slane %v1305, 1
        %v1307 = vadd.f32 %v1305, %v1306
        %v1308 = vadd.f32 %v1226, %v1230
        %v1309 = vadd.f32 %v1308, %v1234
        %v1310 = vadd.f32 %v1309, %v1238
        %v1311 = vadd.f32 %v1310, %v1242
        %v1312 = vadd.f32 %v1311, %v1246
        %v1313 = vadd.f32 %v1312, %v1250
        %v1314 = vadd.f32 %v1313, %v1254
        %v1315 = vadd.f32 %v1314, %v1258
        %v1316 = vadd.f32 %v1315, %v1262
        %v1317 = vadd.f32 %v1316, %v1266
        %v1318 = vadd.f32 %v1317, %v1270
        %v1319 = vadd.f32 %v1318, %v1274
        %v1320 = vadd.f32 %v1319, %v1278
        %v1321 = vadd.f32 %v1320, %v1282
        %v1322 = vadd.f32 %v1321, %v1286
        %v1323 = vrot.slane %v1322, 4
        %v1324 = vadd.f32 %v1322, %v1323
        %v1325 = vrot.slane %v1324, 2
        %v1326 = vadd.f32 %v1324, %v1325
        %v1327 = vrot.slane %v1326, 1
        %v1328 = vadd.f32 %v1326, %v1327
        %v1329 = vrcp.pop %v1307
        %v1330 = vrcp.pop %v1328
        %v1331 = vmul.f32 %v1224, %v1329
        %v1332 = vmul.f32 %v1226, %v1330
        %v1333 = vmul.f32 %v1228, %v1329
        %v1334 = vmul.f32 %v1230, %v1330
        %v1335 = vmul.f32 %v1232, %v1329
        %v1336 = vmul.f32 %v1234, %v1330
        %v1337 = vmul.f32 %v1236, %v1329
        %v1338 = vmul.f32 %v1238, %v1330
        %v1339 = vmul.f32 %v1240, %v1329
        %v1340 = vmul.f32 %v1242, %v1330
        %v1341 = vmul.f32 %v1244, %v1329
        %v1342 = vmul.f32 %v1246, %v1330
        %v1343 = vmul.f32 %v1248, %v1329
        %v1344 = vmul.f32 %v1250, %v1330
        %v1345 = vmul.f32 %v1252, %v1329
        %v1346 = vmul.f32 %v1254, %v1330
        %v1347 = vmul.f32 %v1256, %v1329
        %v1348 = vmul.f32 %v1258, %v1330
        %v1349 = vmul.f32 %v1260, %v1329
        %v1350 = vmul.f32 %v1262, %v1330
        %v1351 = vmul.f32 %v1264, %v1329
        %v1352 = vmul.f32 %v1266, %v1330
        %v1353 = vmul.f32 %v1268, %v1329
        %v1354 = vmul.f32 %v1270, %v1330
        %v1355 = vmul.f32 %v1272, %v1329
        %v1356 = vmul.f32 %v1274, %v1330
        %v1357 = vmul.f32 %v1276, %v1329
        %v1358 = vmul.f32 %v1278, %v1330
        %v1359 = vmul.f32 %v1280, %v1329
        %v1360 = vmul.f32 %v1282, %v1330
        %v1361 = vmul.f32 %v1284, %v1329
        %v1362 = vmul.f32 %v1286, %v1330
        %v1363 = vpack.c.bf16 %v740, %v737
        %v1364 = vpack.c.bf16 %v1333, %v1331
        %v1365 = vpack.c.bf16 %v1334, %v1332
        %v1366 = vpack.c.bf16 %v1337, %v1335
        %v1367 = vpack.c.bf16 %v1338, %v1336
        %v1368 = vpack.c.bf16 %v1341, %v1339
        %v1369 = vpack.c.bf16 %v1342, %v1340
        %v1370 = vpack.c.bf16 %v1345, %v1343
        %v1371 = vpack.c.bf16 %v1346, %v1344
        %v1372 = vpack.c.bf16 %v1349, %v1347
        %v1373 = vpack.c.bf16 %v1350, %v1348
        %v1374 = vpack.c.bf16 %v1353, %v1351
        %v1375 = vpack.c.bf16 %v1354, %v1352
        %v1376 = vpack.c.bf16 %v1357, %v1355
        %v1377 = vpack.c.bf16 %v1358, %v1356
        %v1378 = vpack.c.bf16 %v1361, %v1359
        %v1379 = vpack.c.bf16 %v1362, %v1360
        %1380 = vmatprep.subr.bf16.mxu0 %v1365
        %1381 = vmatpush1.bf16.msra.mxu0 %v1364
        %1382 = vmatprep.subr.bf16.mxu0 %v1367
        %1383 = vmatpush1.bf16.msra.mxu0 %v1366
        %1384 = vmatprep.subr.bf16.mxu0 %v1369
        %1385 = vmatpush1.bf16.msra.mxu0 %v1368
        %1386 = vmatprep.subr.bf16.mxu0 %v1371
        %1387 = vmatpush1.bf16.msra.mxu0 %v1370
        %1388 = vmatprep.subr.bf16.mxu0 %v1373
        %1389 = vmatpush1.bf16.msra.mxu0 %v1372
        %1390 = vmatprep.subr.bf16.mxu0 %v1375
        %1391 = vmatpush1.bf16.msra.mxu0 %v1374
        %1392 = vmatprep.subr.bf16.mxu0 %v1377
        %1393 = vmatpush1.bf16.msra.mxu0 %v1376
        %1394 = vmatprep.subr.bf16.mxu0 %v1379
        %1395 = vmatpush1.bf16.msra.mxu0 %v1378
        %1396 = vmatprep.subr.bf16.mxu0 0
        %1397 = vmatpush1.bf16.msra.mxu0 0
        %1398 = vmatprep.subr.bf16.mxu0 0
        %1399 = vmatpush1.bf16.msra.mxu0 0
        %1400 = vmatprep.subr.bf16.mxu0 0
        %1401 = vmatpush1.bf16.msra.mxu0 0
        %1402 = vmatprep.subr.bf16.mxu0 0
        %1403 = vmatpush1.bf16.msra.mxu0 0
        %1404 = vmatprep.subr.bf16.mxu0 0
        %1405 = vmatpush1.bf16.msra.mxu0 0
        %1406 = vmatprep.subr.bf16.mxu0 0
        %1407 = vmatpush1.bf16.msra.mxu0 0
        %1408 = vmatprep.subr.bf16.mxu0 0
        %1409 = vmatpush1.bf16.msra.mxu0 0
        %1410 = vmatprep.subr.bf16.mxu0 0
        %1411 = vmatpush1.bf16.msra.mxu0 0
        %1412 = vmatprep.mubr.bf16.mxu0 0
        %1413 = vmatmul.mubr.bf16.gmra.mrb[0].mxu0 %v1363
        %v1414 = vpop.f32.mrb[0].mxu0
        %v1415 = vadd.f32 0.0, %v1414
        %v1416 = vpop.f32.mrb[0].mxu0
        %v1417 = vadd.f32 0.0, %v1416
        %v1418 = vpop.f32.mrb[0].mxu0
        %v1419 = vadd.f32 0.0, %v1418
        %v1420 = vpop.f32.mrb[0].mxu0
        %v1421 = vadd.f32 0.0, %v1420
        %1422 = vdwg.mxu0
        %1423 = vst [vmem:[%s513] sm:$0xff] %v1415
        %1424 = vst [vmem:[%s513 + $0x8] sm:$0xff] %v1417
        %1425 = vst [vmem:[%s513 + $0x10] sm:$0xff] %v1419
        %1426 = vst [vmem:[%s513 + $0x18] sm:$0xff] %v1421
        %v1427 = vld [vmem:[%s7] sm:$0xff]
        %v1428 = vld [vmem:[%s7 + $0x8] sm:$0xff]
        %v1429 = vpack.c.bf16 %v1428, %v1427
        %v1430 = vpack.c.bf16 %v1419, %v1415
        %v1431 = vpack.c.bf16 %v1421, %v1417
        %v1432 = vld [vmem:[%s8] sm:$0xff]
        %v1433 = vld [vmem:[%s8 + $0x8] sm:$0xff]
        %1435 = vset.pattern.permute.xlu0 0
        %1436 = vperm.xlu0 %1435, %v1432
        %v1437 = vpop.permute.xlu0 %1436
        %1440 = vset.pattern.permute.xlu0 0
        %1441 = vperm.xlu0 %1440, %v1433
        %v1442 = vpop.permute.xlu0 %1441
        %v1445 = vsel %vm541, %v1429, 0
        %1447 = vmatprep.subr.bf16.mxu0 %v1431
        %1448 = vmatpush1.bf16.msra.mxu0 %v1430
        %1449 = vmatprep.subr.bf16.mxu0 0
        %1450 = vmatpush1.bf16.msra.mxu0 0
        %1451 = vmatprep.subr.bf16.mxu0 0
        %1452 = vmatpush1.bf16.msra.mxu0 0
        %1453 = vmatprep.subr.bf16.mxu0 0
        %1454 = vmatpush1.bf16.msra.mxu0 0
        %1455 = vmatprep.subr.bf16.mxu0 0
        %1456 = vmatpush1.bf16.msra.mxu0 0
        %1457 = vmatprep.subr.bf16.mxu0 0
        %1458 = vmatpush1.bf16.msra.mxu0 0
        %1459 = vmatprep.subr.bf16.mxu0 0
        %1460 = vmatpush1.bf16.msra.mxu0 0
        %1461 = vmatprep.subr.bf16.mxu0 0
        %1462 = vmatpush1.bf16.msra.mxu0 0
        %1463 = vmatprep.subr.bf16.mxu0 0
        %1464 = vmatpush1.bf16.msra.mxu0 0
        %1465 = vmatprep.subr.bf16.mxu0 0
        %1466 = vmatpush1.bf16.msra.mxu0 0
        %1467 = vmatprep.subr.bf16.mxu0 0
        %1468 = vmatpush1.bf16.msra.mxu0 0
        %1469 = vmatprep.subr.bf16.mxu0 0
        %1470 = vmatpush1.bf16.msra.mxu0 0
        %1471 = vmatprep.subr.bf16.mxu0 0
        %1472 = vmatpush1.bf16.msra.mxu0 0
        %1473 = vmatprep.subr.bf16.mxu0 0
        %1474 = vmatpush1.bf16.msra.mxu0 0
        %1475 = vmatprep.subr.bf16.mxu0 0
        %1476 = vmatpush1.bf16.msra.mxu0 0
        %1477 = vmatprep.subr.bf16.mxu0 0
        %1478 = vmatpush1.bf16.msra.mxu0 0
        %1479 = vmatprep.mubr.bf16.mxu0 0
        %1480 = vmatmul.mubr.bf16.gmra.mrb[0].mxu0 %v1445
        %v1481 = vpop.f32.mrb[0].mxu0
        %v1482 = vadd.f32 %v1437, %v1481
        %v1483 = vpop.f32.mrb[0].mxu0
        %v1484 = vadd.f32 %v1437, %v1483
        %v1485 = vpop.f32.mrb[0].mxu0
        %v1486 = vadd.f32 %v1442, %v1485
        %v1487 = vpop.f32.mrb[0].mxu0
        %v1488 = vadd.f32 %v1442, %v1487
        %1489 = vdwg.mxu0
        %v1490 = vld [vmem:[%s9] sm:$0xff]
        %v1491 = vld [vmem:[%s9 + $0x8] sm:$0xff]
        %v1492 = vpack.c.bf16 %v1491, %v1490
        %v1493 = vpack.c.bf16 %v1486, %v1482
        %v1494 = vpack.c.bf16 %v1488, %v1484
        %v1495 = vld [vmem:[#allocation7] sm:$0xff]
        %v1496 = vld [vmem:[#allocation7 + $0x8] sm:$0xff]
        %v1497 = vpack.c.bf16 %v1496, %v1495
        %v1499 = vsel %vm541, %v1497, 0
        %1501 = vmatprep.subr.bf16.mxu0 %v525
        %1502 = vmatpush1.bf16.msra.mxu0 %v524
        %1503 = vmatprep.subr.bf16.mxu0 0
        %1504 = vmatpush1.bf16.msra.mxu0 0
        %1505 = vmatprep.subr.bf16.mxu0 0
        %1506 = vmatpush1.bf16.msra.mxu0 0
        %1507 = vmatprep.subr.bf16.mxu0 0
        %1508 = vmatpush1.bf16.msra.mxu0 0
        %1509 = vmatprep.subr.bf16.mxu0 0
        %1510 = vmatpush1.bf16.msra.mxu0 0
        %1511 = vmatprep.subr.bf16.mxu0 0
        %1512 = vmatpush1.bf16.msra.mxu0 0
        %1513 = vmatprep.subr.bf16.mxu0 0
        %1514 = vmatpush1.bf16.msra.mxu0 0
        %1515 = vmatprep.subr.bf16.mxu0 0
        %1516 = vmatpush1.bf16.msra.mxu0 0
        %1517 = vmatprep.subr.bf16.mxu0 0
        %1518 = vmatpush1.bf16.msra.mxu0 0
        %1519 = vmatprep.subr.bf16.mxu0 0
        %1520 = vmatpush1.bf16.msra.mxu0 0
        %1521 = vmatprep.subr.bf16.mxu0 0
        %1522 = vmatpush1.bf16.msra.mxu0 0
        %1523 = vmatprep.subr.bf16.mxu0 0
        %1524 = vmatpush1.bf16.msra.mxu0 0
        %1525 = vmatprep.subr.bf16.mxu0 0
        %1526 = vmatpush1.bf16.msra.mxu0 0
        %1527 = vmatprep.subr.bf16.mxu0 0
        %1528 = vmatpush1.bf16.msra.mxu0 0
        %1529 = vmatprep.subr.bf16.mxu0 0
        %1530 = vmatpush1.bf16.msra.mxu0 0
        %1531 = vmatprep.subr.bf16.mxu0 0
        %1532 = vmatpush1.bf16.msra.mxu0 0
        %1533 = vmatprep.mubr.bf16.mxu0 0
        %1534 = vmatmul.mubr.bf16.gmra.mrb[0].mxu0 %v1499
        %v1535 = vpop.f32.mrb[0].mxu0
        %v1536 = vadd.f32 0.0, %v1535
        %v1537 = vpop.f32.mrb[0].mxu0
        %v1538 = vadd.f32 0.0, %v1537
        %v1539 = vpop.f32.mrb[0].mxu0
        %v1540 = vadd.f32 0.0, %v1539
        %v1541 = vpop.f32.mrb[0].mxu0
        %v1542 = vadd.f32 0.0, %v1541
        %1543 = vdwg.mxu0
        %v1545 = vsel %vm541, %v1492, 0
        %1547 = vmatprep.subr.bf16.mxu0 %v1494
        %1548 = vmatpush1.bf16.msra.mxu0 %v1493
        %1549 = vmatprep.subr.bf16.mxu0 0
        %1550 = vmatpush1.bf16.msra.mxu0 0
        %1551 = vmatprep.subr.bf16.mxu0 0
        %1552 = vmatpush1.bf16.msra.mxu0 0
        %1553 = vmatprep.subr.bf16.mxu0 0
        %1554 = vmatpush1.bf16.msra.mxu0 0
        %1555 = vmatprep.subr.bf16.mxu0 0
        %1556 = vmatpush1.bf16.msra.mxu0 0
        %1557 = vmatprep.subr.bf16.mxu0 0
        %1558 = vmatpush1.bf16.msra.mxu0 0
        %1559 = vmatprep.subr.bf16.mxu0 0
        %1560 = vmatpush1.bf16.msra.mxu0 0
        %1561 = vmatprep.subr.bf16.mxu0 0
        %1562 = vmatpush1.bf16.msra.mxu0 0
        %1563 = vmatprep.subr.bf16.mxu0 0
        %1564 = vmatpush1.bf16.msra.mxu0 0
        %1565 = vmatprep.subr.bf16.mxu0 0
        %1566 = vmatpush1.bf16.msra.mxu0 0
        %1567 = vmatprep.subr.bf16.mxu0 0
        %1568 = vmatpush1.bf16.msra.mxu0 0
        %1569 = vmatprep.subr.bf16.mxu0 0
        %1570 = vmatpush1.bf16.msra.mxu0 0
        %1571 = vmatprep.subr.bf16.mxu0 0
        %1572 = vmatpush1.bf16.msra.mxu0 0
        %1573 = vmatprep.subr.bf16.mxu0 0
        %1574 = vmatpush1.bf16.msra.mxu0 0
        %1575 = vmatprep.subr.bf16.mxu0 0
        %1576 = vmatpush1.bf16.msra.mxu0 0
        %1577 = vmatprep.subr.bf16.mxu0 0
        %1578 = vmatpush1.bf16.msra.mxu0 0
        %1579 = vmatprep.mubr.bf16.mxu0 0
        %1580 = vmatmul.mubr.bf16.gmra.mrb[0].mxu0 %v1545
        %v1581 = vpop.f32.mrb[0].mxu0
        %v1582 = vadd.f32 %v1536, %v1581
        %v1583 = vpop.f32.mrb[0].mxu0
        %v1584 = vadd.f32 %v1538, %v1583
        %v1585 = vpop.f32.mrb[0].mxu0
        %v1586 = vadd.f32 %v1540, %v1585
        %v1587 = vpop.f32.mrb[0].mxu0
        %v1588 = vadd.f32 %v1542, %v1587
        %1589 = vdwg.mxu0
        %v1590 = vld [vmem:[%s11] sm:$0xff]
        %v1591 = vld [vmem:[%s11 + $0x8] sm:$0xff]
        %1593 = vset.pattern.permute.xlu0 0
        %1594 = vperm.xlu0 %1593, %v1590
        %v1595 = vpop.permute.xlu0 %1594
        %1598 = vset.pattern.permute.xlu0 0
        %1599 = vperm.xlu0 %1598, %v1591
        %v1600 = vpop.permute.xlu0 %1599
        %v1602 = vmul.f32 %v1582, %v1595
        %v1603 = vmul.f32 %v1584, %v1595
        %v1604 = vmul.f32 %v1586, %v1600
        %v1605 = vmul.f32 %v1588, %v1600
        %v1606 = vld [vmem:[%s12] sm:$0xff]
        %v1607 = vld [vmem:[%s12 + $0x8] sm:$0xff]
        %1609 = vset.pattern.permute.xlu0 0
        %1610 = vperm.xlu0 %1609, %v1606
        %v1611 = vpop.permute.xlu0 %1610
        %1614 = vset.pattern.permute.xlu0 0
        %1615 = vperm.xlu0 %1614, %v1607
        %v1616 = vpop.permute.xlu0 %1615
        %v1618 = vadd.f32 %v1602, %v1611
        %v1619 = vadd.f32 %v1603, %v1611
        %v1620 = vadd.f32 %v1604, %v1616
        %v1621 = vadd.f32 %v1605, %v1616
        %v1622 = vmax.f32 %v1618, 0.0
        %v1623 = vmax.f32 %v1619, 0.0
        %v1624 = vmax.f32 %v1620, 0.0
        %v1625 = vmax.f32 %v1621, 0.0
        %1626 = vst [vmem:[%s506] sm:$0xff] %v1622
        %1627 = vst [vmem:[%s506 + $0x8] sm:$0xff] %v1623
        %1628 = vst [vmem:[%s506 + $0x10] sm:$0xff] %v1624
        %1629 = vst [vmem:[%s506 + $0x18] sm:$0xff] %v1625
        %s1630 = sand.u32 %s320, 1
        %s1631 = scalar_lea.sflag [#allocation4], %s1630
        %s1632 = sand.u32 %s320, 1
        %s1633 = smul.addr %s1632, 32
        %s1634 = scalar_lea.vmem [#allocation8], %s1633
        %s1635 = sand.u32 %s346, 1
        %s1636 = scalar_lea.sflag [#allocation10], %s1635
        %s1637 = sand.u32 %s346, 1
        %s1638 = smul.addr %s1637, 32
        %s1639 = scalar_lea.vmem [#allocation9], %s1638
        // Predicated region
        $region85: #{tpu_custom_call.1} parent=71 // pred_check
          %p1640 = pneg %p330
        $region86: #{tpu_custom_call.1} parent=71 // pred_check_branch
          %1642 = sbr.rel (%p1640) target = $region88
        $region87: #{tpu_custom_call.1} parent=71 // pred_region
          %s1644 = ssub.s32 512, 512
          %1645 = vsyncadd %s1631, %s1644
          %s1646 = smul.addr %s34, 4
          %s1647 = smul.addr %s1646, 128
          %s1648 = scalar_lea.hbm %s13, %s1647
          %s1649 = sshll.u32 %s1634, 4
          %s1650 = int_to_ptr.vmem [resolvable:$true] %s1649
          %1655 = dma.vmem_to_hbm [thread:$0]  %s1650, 512, %s1648, %s1631, 256, 256, 16
        $region88: #{tpu_custom_call.1} parent=71 // pred_fallthru
          _
        // Predicated region
        $region89: #{tpu_custom_call.1} parent=71 // pred_check
          %p1656 = pneg %p356
        $region90: #{tpu_custom_call.1} parent=71 // pred_check_branch
          %1658 = sbr.rel (%p1656) target = $region92
        $region91: #{tpu_custom_call.1} parent=71 // pred_region
          %s1660 = ssub.s32 512, 512
          %1661 = vsyncadd %s1636, %s1660
          %s1662 = smul.addr %s34, 4
          %s1663 = smul.addr %s1662, 128
          %s1664 = scalar_lea.hbm %s14, %s1663
          %s1665 = sshll.u32 %s1639, 4
          %s1666 = int_to_ptr.vmem [resolvable:$true] %s1665
          %1671 = dma.vmem_to_hbm [thread:$0]  %s1666, 512, %s1664, %s1636, 256, 256, 16
        $region92: #{tpu_custom_call.1} parent=71 // pred_fallthru
          _
      $region72: #{tpu_custom_call.1} parent=5 // pred_fallthru
        _
      %p1672 = scmp.le.s32.totalorder 2, %s29
      // Predicated region
      $region93: #{tpu_custom_call.1} parent=5 // pred_check
        %p1673 = pneg %p1672
      $region94: #{tpu_custom_call.1} parent=5 // pred_check_branch
        %1675 = sbr.rel (%p1673) target = $region96
      $region95: #{tpu_custom_call.1} parent=5 // pred_region
        %s1676 = ssub.s32 %s29, 2
        // Predicated region
        $region97: #{tpu_custom_call.1} parent=95 // pred_check
          %p1677 = pneg %p336
        $region98: #{tpu_custom_call.1} parent=95 // pred_check_branch
          %1679 = sbr.rel (%p1677) target = $region100
        $region99: #{tpu_custom_call.1} parent=95 // pred_region
          %s1680 = sand.u32 %s321, 1
          %s1681 = scalar_lea.sflag [#allocation4], %s1680
          %s1682 = sand.u32 %s321, 1
          %s1683 = smul.addr %s1682, 32
          %s1684 = scalar_lea.vmem [#allocation8], %s1683
          %1685 = dma.done %s1681, 512
        $region100: #{tpu_custom_call.1} parent=95 // pred_fallthru
          _
        // Predicated region
        $region101: #{tpu_custom_call.1} parent=95 // pred_check
          %p1686 = pneg %p362
        $region102: #{tpu_custom_call.1} parent=95 // pred_check_branch
          %1688 = sbr.rel (%p1686) target = $region104
        $region103: #{tpu_custom_call.1} parent=95 // pred_region
          %s1689 = sand.u32 %s347, 1
          %s1690 = scalar_lea.sflag [#allocation10], %s1689
          %s1691 = sand.u32 %s347, 1
          %s1692 = smul.addr %s1691, 32
          %s1693 = scalar_lea.vmem [#allocation9], %s1692
          %1694 = dma.done %s1690, 512
        $region104: #{tpu_custom_call.1} parent=95 // pred_fallthru
          _
      $region96: #{tpu_custom_call.1} parent=5 // pred_fallthru
        _
    $region6: #{tpu_custom_call.1} parent=1 // loop_footer
      %s33 = sadd.s32 1, %s29
    $region7: #{tpu_custom_call.1} parent=1 // loop_footer_branch
      %28 = sbr.rel target = $region3
    $region8: #{tpu_custom_call.1} parent=1 // loop_exit
      _
    %1695 = vsyncpa [#allocation3], 1
    %s1696 = scalar_lea.sflag [#allocation3], 1
    %1697 = vsyncpa %s1696, 1
    %1698 = vsyncpa [#allocation6], 1
    %1699 = vsyncpa [#allocation4], 1
    %s1700 = scalar_lea.sflag [#allocation4], 1
    %1701 = vsyncpa %s1700, 1
    %1702 = vsyncpa [#allocation10], 1
    %s1703 = scalar_lea.sflag [#allocation10], 1
    %1704 = vsyncpa %s1703, 1

</llo_original>
